<compile_context>
chip_gen: v7x
topology: tpu7x:2x2x1
jax: 0.10.0
libtpu: 0.0.40
codegen_flags: <defaults>
</compile_context>

<pallas_src>
import jax
import jax.numpy as jnp
from jax.experimental import pallas as pl
from jax.experimental.pallas import tpu as pltpu

EPS = 1e-5


def _round_up(v, m):
    return ((v + m - 1) // m) * m


def _vmem_capacity_bytes():
    try:
        info = pltpu.get_tpu_info()
        cap = getattr(info, "vmem_capacity_bytes", None)
        if cap:
            return int(cap)
    except Exception:
        pass
    return 64 << 20  # conservative default (v7x per-TensorCore VMEM)


def _pick_tile_h(H, C, W, budget_bytes):
    """Largest band height that divides H, is 8-row aligned (unless == H),
    and keeps ~4 band-sized f32 buffers under `budget_bytes`."""
    wp = _round_up(W, 128)
    per_row = 4 * C * wp * 4
    max_rows = max(8, budget_bytes // max(per_row, 1))
    best = None
    for th in range(1, H + 1):
        if H % th:
            continue
        if th != H and th % 8 != 0:
            continue  # halo blocks require 8-row alignment
        if th <= max_rows and (best is None or th > best):
            best = th
    if best is None:
        # TODO(synk): cdiv grid + masked last band instead of full-H fallback.
        best = H
    return best


def _conv_body(band_ref, top_ref, bot_ref, w_ref, conv_ref, stats_ref,
               work_ref, shf_ref, C, TH, W, has_halo):
    j = pl.program_id(1)
    nbh = pl.num_programs(1)

    # ---- assemble the row-haloed band (TH+2 rows) in VMEM scratch ---------
    zero_row = jnp.zeros((1, W), jnp.float32)
    if has_halo:
        top_gate = (j > 0).astype(jnp.float32)
        bot_gate = (j < nbh - 1).astype(jnp.float32)
    for c in range(C):
        work_ref[c, 1:TH + 1, :] = band_ref[0, c]
        if has_halo:
            work_ref[c, 0:1, :] = top_ref[0, c, 7:8, :] * top_gate
            work_ref[c, TH + 1:TH + 2, :] = bot_ref[0, c, 0:1, :] * bot_gate
        else:
            work_ref[c, 0:1, :] = zero_row
            work_ref[c, TH + 1:TH + 2, :] = zero_row

    # ---- 3x3 conv: lane-aligned slab loads, 6 independent accumulators ----
    # S[o][kw][y, x] = sum_{c,kh} w[o,c,kh,kw] * work[c, y+kh, x]
    S = [[None, None, None], [None, None, None]]
    for c in range(C):
        for kh in range(3):
            slab = work_ref[c, kh:kh + TH, :]              # (TH, W), aligned
            for o in range(2):
                base = ((o * C + c) * 3 + kh) * 3
                for kw in range(3):
                    t = w_ref[base + kw] * slab
                    S[o][kw] = t if S[o][kw] is None else S[o][kw] + t

    # ---- resolve the kw=0 / kw=2 column shifts via zero-padded scratch ----
    # conv[o,y,x] = S0[y,x-1] + S1[y,x] + S2[y,x+1]  (zero outside [0,W)).
    shf_ref[0, :, 0:1] = jnp.zeros((TH, 1), jnp.float32)
    shf_ref[1, :, W:W + 1] = jnp.zeros((TH, 1), jnp.float32)
    for o in range(2):
        shf_ref[0, :, 1:W + 1] = S[o][0]
        shf_ref[1, :, 0:W] = S[o][2]
        conv_o = S[o][1] + shf_ref[0, :, 0:W] + shf_ref[1, :, 1:W + 1]
        conv_ref[0, o] = conv_o
        # per-band, per-column partial stats (reduced to scalars outside).
        stats_ref[0, 0, o:o + 1, :] = jnp.sum(conv_o, axis=0, keepdims=True)
        stats_ref[0, 0, 2 + o:3 + o, :] = jnp.sum(conv_o * conv_o, axis=0,
                                                  keepdims=True)


def _make_conv_kernel(C, TH, W, has_halo):
    if has_halo:
        def kernel(band_ref, top_ref, bot_ref, w_ref, conv_ref, stats_ref,
                   work_ref, shf_ref):
            _conv_body(band_ref, top_ref, bot_ref, w_ref, conv_ref, stats_ref,
                       work_ref, shf_ref, C, TH, W, True)
    else:
        def kernel(band_ref, w_ref, conv_ref, stats_ref, work_ref, shf_ref):
            _conv_body(band_ref, None, None, w_ref, conv_ref, stats_ref,
                       work_ref, shf_ref, C, TH, W, False)
    return kernel


def _bn_sigmoid_kernel(conv_ref, scale_ref, shift_ref, out_ref):
    for o in range(2):
        y = conv_ref[0, o] * scale_ref[o] + shift_ref[o]
        # 0.3*sigmoid(y) == 0.15 + 0.15*tanh(y/2): single EUP op.
        out_ref[0, o] = 0.15 * jnp.tanh(0.5 * y) + 0.15


def get_disp_forward(x, weight, bias, gamma, beta, *, tile_h=None):
    """Forward pass of get_disp (train-mode BatchNorm batch statistics).

    x:      (B, C, H, W) float32 NCHW
    weight: (2, C, 3, 3) conv weight (OIHW)
    bias:   (2,) conv bias — cancelled exactly by train-mode BN mean subtraction
    gamma:  (2,) BatchNorm weight,  beta: (2,) BatchNorm bias
    returns (B, 2, H, W) float32
    """
    del bias  # cancelled exactly by the BatchNorm mean subtraction
    B, C, H, W = x.shape
    x = x.astype(jnp.float32)

    cap = _vmem_capacity_bytes()
    budget = min(int(0.30 * cap), 24 << 20)
    TH = _pick_tile_h(H, C, W, budget) if tile_h is None else int(tile_h)
    assert H % TH == 0, "tile_h must divide H"
    nbh = H // TH
    has_halo = nbh > 1
    if has_halo:
        assert TH % 8 == 0 and H % 8 == 0, (
            "multi-band path requires 8-row-aligned bands")

    w_flat = weight.astype(jnp.float32).reshape(2 * C * 9)
    th8 = TH // 8 if has_halo else 1
    hb = max(H // 8, 1)

    in_specs = [pl.BlockSpec((1, C, TH, W), lambda b, j: (b, 0, j, 0))]
    args = [x]
    if has_halo:
        in_specs.append(pl.BlockSpec(
            (1, C, 8, W),
            lambda b, j: (b, 0, jnp.maximum(j * th8 - 1, 0), 0)))
        in_specs.append(pl.BlockSpec(
            (1, C, 8, W),
            lambda b, j: (b, 0, jnp.minimum((j + 1) * th8, hb - 1), 0)))
        args += [x, x]
    in_specs.append(pl.BlockSpec(memory_space=pltpu.MemorySpace.SMEM))
    args.append(w_flat)

    # Generation-aware VMEM limit (padded layout sizes, 2x headroom).
    wp = _round_up(W, 128)
    thp = _round_up(TH, 8)
    band_b = C * thp * wp * 4
    need = (2 * band_b
            + (4 * C * 8 * wp * 4 if has_halo else 0)
            + C * _round_up(TH + 2, 8) * wp * 4
            + 2 * thp * _round_up(W + 1, 128) * 4
            + 2 * 2 * thp * wp * 4
            + 2 * 8 * wp * 4)
    vmem_limit = int(min(int(0.9 * cap), max(16 << 20, 2 * need + (1 << 20))))

    conv_out, stats = pl.pallas_call(
        _make_conv_kernel(C, TH, W, has_halo),
        out_shape=(jax.ShapeDtypeStruct((B, 2, H, W), jnp.float32),
                   jax.ShapeDtypeStruct((B, nbh, 4, W), jnp.float32)),
        grid=(B, nbh),
        in_specs=in_specs,
        out_specs=(pl.BlockSpec((1, 2, TH, W), lambda b, j: (b, 0, j, 0)),
                   pl.BlockSpec((1, 1, 4, W), lambda b, j: (b, j, 0, 0))),
        scratch_shapes=[pltpu.VMEM((C, TH + 2, W), jnp.float32),
                        pltpu.VMEM((2, TH, W + 1), jnp.float32)],
        compiler_params=pltpu.CompilerParams(
            dimension_semantics=("parallel", "parallel"),
            vmem_limit_bytes=vmem_limit),
    )(*args)

    # Tiny global reduction of the per-band partial sums (plain XLA).
    n = float(B * H * W)
    ch_sum = jnp.sum(stats[:, :, 0:2, :], axis=(0, 1, 3))            # (2,)
    ch_sq = jnp.sum(stats[:, :, 2:4, :], axis=(0, 1, 3))             # (2,)
    mean = ch_sum / n
    var = jnp.maximum(ch_sq / n - mean * mean, 0.0)
    scale = gamma.astype(jnp.float32) * jax.lax.rsqrt(var + EPS)     # (2,)
    shift = beta.astype(jnp.float32) - mean * scale                  # (2,)

    # Pass 2: streamed folded-BN affine + 0.3*sigmoid.
    out = pl.pallas_call(
        _bn_sigmoid_kernel,
        out_shape=jax.ShapeDtypeStruct((B, 2, H, W), jnp.float32),
        grid=(B, nbh),
        in_specs=[pl.BlockSpec((1, 2, TH, W), lambda b, j: (b, 0, j, 0)),
                  pl.BlockSpec(memory_space=pltpu.MemorySpace.SMEM),
                  pl.BlockSpec(memory_space=pltpu.MemorySpace.SMEM)],
        out_specs=pl.BlockSpec((1, 2, TH, W), lambda b, j: (b, 0, j, 0)),
        compiler_params=pltpu.CompilerParams(
            dimension_semantics=("parallel", "parallel"),
            vmem_limit_bytes=vmem_limit),
    )(conv_out, scale, shift)
    return out


def _reference(x, weight, bias, gamma, beta):
    conv = jax.lax.conv_general_dilated(
        x, weight, window_strides=(1, 1), padding=((1, 1), (1, 1)),
        dimension_numbers=("NCHW", "OIHW", "NCHW"))
    conv = conv + bias.reshape(1, 2, 1, 1)
    mean = jnp.mean(conv, axis=(0, 2, 3), keepdims=True)
    var = jnp.mean((conv - mean) ** 2, axis=(0, 2, 3), keepdims=True)
    xn = (conv - mean) * jax.lax.rsqrt(var + EPS)
    y = gamma.reshape(1, 2, 1, 1) * xn + beta.reshape(1, 2, 1, 1)
    return 0.3 * jax.nn.sigmoid(y)


if __name__ == "__main__":
    B, C, H, W = 2, 4, 16, 16
    key = jax.random.PRNGKey(0)
    kx, kw, kb, kg, kbe = jax.random.split(key, 5)

    x = jax.random.normal(kx, (B, C, H, W), dtype=jnp.float32)
    weight = 0.1 * jax.random.normal(kw, (2, C, 3, 3), dtype=jnp.float32)
    bias = 0.05 * jax.random.normal(kb, (2,), dtype=jnp.float32)
    gamma = 1.0 + 0.2 * jax.random.normal(kg, (2,), dtype=jnp.float32)
    beta = 0.1 * jax.random.normal(kbe, (2,), dtype=jnp.float32)

    # tile_h=8 -> grid (2, 2): exercises the multi-band halo-stitching path.
    out = jax.block_until_ready(
        get_disp_forward(x, weight, bias, gamma, beta, tile_h=8))

    ref = jax.block_until_ready(_reference(x, weight, bias, gamma, beta))
    assert out.shape == (B, 2, H, W)
    err = float(jnp.max(jnp.abs(out - ref)))
    assert err < 2e-3, f"mismatch vs reference: max abs err {err}"
    print("KERNEL_OK")
</pallas_src>

<mosaic_0001>
module attributes {stable_mosaic.version = 11 : i64} {
  func.func @kernel(%arg0: i32, %arg1: i32, %arg2: memref<1x4x8x16xf32, #tpu.memory_space<vmem>>, %arg3: memref<1x4x8x16xf32, #tpu.memory_space<vmem>>, %arg4: memref<1x4x8x16xf32, #tpu.memory_space<vmem>>, %arg5: memref<72xf32, #tpu.memory_space<smem>>, %arg6: memref<1x2x8x16xf32, #tpu.memory_space<vmem>>, %arg7: memref<1x1x4x16xf32, #tpu.memory_space<vmem>>, %arg8: memref<4x10x16xf32, #tpu.memory_space<vmem>>, %arg9: memref<2x8x17xf32, #tpu.memory_space<vmem>>) attributes {dimension_semantics = [#tpu.dimension_semantics<parallel>, #tpu.dimension_semantics<parallel>], iteration_bounds = array<i64: 2, 2>, scalar_prefetch = 0 : i64, scratch_operands = 2 : i64, tpu.core_type = #tpu.core_type<tc>, window_params = [{transform_indices = @transform_0, window_bounds = array<i64: 1, 4, 8, 16>}, {transform_indices = @transform_1, window_bounds = array<i64: 1, 4, 8, 16>}, {transform_indices = @transform_2, window_bounds = array<i64: 1, 4, 8, 16>}, {transform_indices = @transform_3, window_bounds = array<i64: 72>}, {transform_indices = @transform_4, window_bounds = array<i64: 1, 2, 8, 16>}, {transform_indices = @transform_5, window_bounds = array<i64: 1, 1, 4, 16>}]} {
    %c0_i32 = arith.constant 0 : i32
    %0 = arith.cmpi sgt, %arg1, %c0_i32 : i32
    %1 = arith.extui %0 : i1 to i32
    %2 = arith.sitofp %1 : i32 to f32
    %c1_i32 = arith.constant 1 : i32
    %3 = arith.cmpi slt, %arg1, %c1_i32 : i32
    %4 = arith.extui %3 : i1 to i32
    %5 = arith.sitofp %4 : i32 to f32
    %c0 = arith.constant 0 : index
    %c0_0 = arith.constant 0 : index
    %c0_1 = arith.constant 0 : index
    %c0_2 = arith.constant 0 : index
    %6 = vector.load %arg2[%c0, %c0_0, %c0_1, %c0_2] : memref<1x4x8x16xf32, #tpu.memory_space<vmem>>, vector<1x1x8x16xf32>
    %7 = vector.shape_cast %6 : vector<1x1x8x16xf32> to vector<8x16xf32>
    %c0_3 = arith.constant 0 : index
    %c1 = arith.constant 1 : index
    %c0_4 = arith.constant 0 : index
    %8 = vector.load %arg8[%c0_3, %c1, %c0_4] : memref<4x10x16xf32, #tpu.memory_space<vmem>>, vector<1x8x16xf32>
    %9 = vector.shape_cast %8 : vector<1x8x16xf32> to vector<8x16xf32>
    %10 = vector.shape_cast %7 : vector<8x16xf32> to vector<1x8x16xf32>
    tpu.vector_store %arg8[%c0_3, %c1, %c0_4], %10 {strides = array<i32>} : memref<4x10x16xf32, #tpu.memory_space<vmem>>, vector<1x8x16xf32>,
    %c0_5 = arith.constant 0 : index
    %c0_6 = arith.constant 0 : index
    %c7 = arith.constant 7 : index
    %c0_7 = arith.constant 0 : index
    %11 = vector.load %arg3[%c0_5, %c0_6, %c7, %c0_7] : memref<1x4x8x16xf32, #tpu.memory_space<vmem>>, vector<1x1x1x16xf32>
    %12 = vector.shape_cast %11 : vector<1x1x1x16xf32> to vector<1x16xf32>
    %13 = vector.broadcast %2 : f32 to vector<1x16xf32>
    %14 = arith.mulf %12, %13 : vector<1x16xf32>
    %c0_8 = arith.constant 0 : index
    %c0_9 = arith.constant 0 : index
    %c0_10 = arith.constant 0 : index
    %15 = vector.load %arg8[%c0_8, %c0_9, %c0_10] : memref<4x10x16xf32, #tpu.memory_space<vmem>>, vector<1x1x16xf32>
    %16 = vector.shape_cast %15 : vector<1x1x16xf32> to vector<1x16xf32>
    %17 = vector.shape_cast %14 : vector<1x16xf32> to vector<1x1x16xf32>
    tpu.vector_store %arg8[%c0_8, %c0_9, %c0_10], %17 {strides = array<i32>} : memref<4x10x16xf32, #tpu.memory_space<vmem>>, vector<1x1x16xf32>,
    %c0_11 = arith.constant 0 : index
    %c0_12 = arith.constant 0 : index
    %c0_13 = arith.constant 0 : index
    %c0_14 = arith.constant 0 : index
    %18 = vector.load %arg4[%c0_11, %c0_12, %c0_13, %c0_14] : memref<1x4x8x16xf32, #tpu.memory_space<vmem>>, vector<1x1x1x16xf32>
    %19 = vector.shape_cast %18 : vector<1x1x1x16xf32> to vector<1x16xf32>
    %20 = vector.broadcast %5 : f32 to vector<1x16xf32>
    %21 = arith.mulf %19, %20 : vector<1x16xf32>
    %c0_15 = arith.constant 0 : index
    %c9 = arith.constant 9 : index
    %c0_16 = arith.constant 0 : index
    %22 = vector.load %arg8[%c0_15, %c9, %c0_16] : memref<4x10x16xf32, #tpu.memory_space<vmem>>, vector<1x1x16xf32>
    %23 = vector.shape_cast %22 : vector<1x1x16xf32> to vector<1x16xf32>
    %24 = vector.shape_cast %21 : vector<1x16xf32> to vector<1x1x16xf32>
    tpu.vector_store %arg8[%c0_15, %c9, %c0_16], %24 {strides = array<i32>} : memref<4x10x16xf32, #tpu.memory_space<vmem>>, vector<1x1x16xf32>,
    %c0_17 = arith.constant 0 : index
    %c1_18 = arith.constant 1 : index
    %c0_19 = arith.constant 0 : index
    %c0_20 = arith.constant 0 : index
    %25 = vector.load %arg2[%c0_17, %c1_18, %c0_19, %c0_20] : memref<1x4x8x16xf32, #tpu.memory_space<vmem>>, vector<1x1x8x16xf32>
    %26 = vector.shape_cast %25 : vector<1x1x8x16xf32> to vector<8x16xf32>
    %c1_21 = arith.constant 1 : index
    %c1_22 = arith.constant 1 : index
    %c0_23 = arith.constant 0 : index
    %27 = vector.load %arg8[%c1_21, %c1_22, %c0_23] : memref<4x10x16xf32, #tpu.memory_space<vmem>>, vector<1x8x16xf32>
    %28 = vector.shape_cast %27 : vector<1x8x16xf32> to vector<8x16xf32>
    %29 = vector.shape_cast %26 : vector<8x16xf32> to vector<1x8x16xf32>
    tpu.vector_store %arg8[%c1_21, %c1_22, %c0_23], %29 {strides = array<i32>} : memref<4x10x16xf32, #tpu.memory_space<vmem>>, vector<1x8x16xf32>,
    %c0_24 = arith.constant 0 : index
    %c1_25 = arith.constant 1 : index
    %c7_26 = arith.constant 7 : index
    %c0_27 = arith.constant 0 : index
    %30 = vector.load %arg3[%c0_24, %c1_25, %c7_26, %c0_27] : memref<1x4x8x16xf32, #tpu.memory_space<vmem>>, vector<1x1x1x16xf32>
    %31 = vector.shape_cast %30 : vector<1x1x1x16xf32> to vector<1x16xf32>
    %32 = vector.broadcast %2 : f32 to vector<1x16xf32>
    %33 = arith.mulf %31, %32 : vector<1x16xf32>
    %c1_28 = arith.constant 1 : index
    %c0_29 = arith.constant 0 : index
    %c0_30 = arith.constant 0 : index
    %34 = vector.load %arg8[%c1_28, %c0_29, %c0_30] : memref<4x10x16xf32, #tpu.memory_space<vmem>>, vector<1x1x16xf32>
    %35 = vector.shape_cast %34 : vector<1x1x16xf32> to vector<1x16xf32>
    %36 = vector.shape_cast %33 : vector<1x16xf32> to vector<1x1x16xf32>
    tpu.vector_store %arg8[%c1_28, %c0_29, %c0_30], %36 {strides = array<i32>} : memref<4x10x16xf32, #tpu.memory_space<vmem>>, vector<1x1x16xf32>,
    %c0_31 = arith.constant 0 : index
    %c1_32 = arith.constant 1 : index
    %c0_33 = arith.constant 0 : index
    %c0_34 = arith.constant 0 : index
    %37 = vector.load %arg4[%c0_31, %c1_32, %c0_33, %c0_34] : memref<1x4x8x16xf32, #tpu.memory_space<vmem>>, vector<1x1x1x16xf32>
    %38 = vector.shape_cast %37 : vector<1x1x1x16xf32> to vector<1x16xf32>
    %39 = vector.broadcast %5 : f32 to vector<1x16xf32>
    %40 = arith.mulf %38, %39 : vector<1x16xf32>
    %c1_35 = arith.constant 1 : index
    %c9_36 = arith.constant 9 : index
    %c0_37 = arith.constant 0 : index
    %41 = vector.load %arg8[%c1_35, %c9_36, %c0_37] : memref<4x10x16xf32, #tpu.memory_space<vmem>>, vector<1x1x16xf32>
    %42 = vector.shape_cast %41 : vector<1x1x16xf32> to vector<1x16xf32>
    %43 = vector.shape_cast %40 : vector<1x16xf32> to vector<1x1x16xf32>
    tpu.vector_store %arg8[%c1_35, %c9_36, %c0_37], %43 {strides = array<i32>} : memref<4x10x16xf32, #tpu.memory_space<vmem>>, vector<1x1x16xf32>,
    %c0_38 = arith.constant 0 : index
    %c2 = arith.constant 2 : index
    %c0_39 = arith.constant 0 : index
    %c0_40 = arith.constant 0 : index
    %44 = vector.load %arg2[%c0_38, %c2, %c0_39, %c0_40] : memref<1x4x8x16xf32, #tpu.memory_space<vmem>>, vector<1x1x8x16xf32>
    %45 = vector.shape_cast %44 : vector<1x1x8x16xf32> to vector<8x16xf32>
    %c2_41 = arith.constant 2 : index
    %c1_42 = arith.constant 1 : index
    %c0_43 = arith.constant 0 : index
    %46 = vector.load %arg8[%c2_41, %c1_42, %c0_43] : memref<4x10x16xf32, #tpu.memory_space<vmem>>, vector<1x8x16xf32>
    %47 = vector.shape_cast %46 : vector<1x8x16xf32> to vector<8x16xf32>
    %48 = vector.shape_cast %45 : vector<8x16xf32> to vector<1x8x16xf32>
    tpu.vector_store %arg8[%c2_41, %c1_42, %c0_43], %48 {strides = array<i32>} : memref<4x10x16xf32, #tpu.memory_space<vmem>>, vector<1x8x16xf32>,
    %c0_44 = arith.constant 0 : index
    %c2_45 = arith.constant 2 : index
    %c7_46 = arith.constant 7 : index
    %c0_47 = arith.constant 0 : index
    %49 = vector.load %arg3[%c0_44, %c2_45, %c7_46, %c0_47] : memref<1x4x8x16xf32, #tpu.memory_space<vmem>>, vector<1x1x1x16xf32>
    %50 = vector.shape_cast %49 : vector<1x1x1x16xf32> to vector<1x16xf32>
    %51 = vector.broadcast %2 : f32 to vector<1x16xf32>
    %52 = arith.mulf %50, %51 : vector<1x16xf32>
    %c2_48 = arith.constant 2 : index
    %c0_49 = arith.constant 0 : index
    %c0_50 = arith.constant 0 : index
    %53 = vector.load %arg8[%c2_48, %c0_49, %c0_50] : memref<4x10x16xf32, #tpu.memory_space<vmem>>, vector<1x1x16xf32>
    %54 = vector.shape_cast %53 : vector<1x1x16xf32> to vector<1x16xf32>
    %55 = vector.shape_cast %52 : vector<1x16xf32> to vector<1x1x16xf32>
    tpu.vector_store %arg8[%c2_48, %c0_49, %c0_50], %55 {strides = array<i32>} : memref<4x10x16xf32, #tpu.memory_space<vmem>>, vector<1x1x16xf32>,
    %c0_51 = arith.constant 0 : index
    %c2_52 = arith.constant 2 : index
    %c0_53 = arith.constant 0 : index
    %c0_54 = arith.constant 0 : index
    %56 = vector.load %arg4[%c0_51, %c2_52, %c0_53, %c0_54] : memref<1x4x8x16xf32, #tpu.memory_space<vmem>>, vector<1x1x1x16xf32>
    %57 = vector.shape_cast %56 : vector<1x1x1x16xf32> to vector<1x16xf32>
    %58 = vector.broadcast %5 : f32 to vector<1x16xf32>
    %59 = arith.mulf %57, %58 : vector<1x16xf32>
    %c2_55 = arith.constant 2 : index
    %c9_56 = arith.constant 9 : index
    %c0_57 = arith.constant 0 : index
    %60 = vector.load %arg8[%c2_55, %c9_56, %c0_57] : memref<4x10x16xf32, #tpu.memory_space<vmem>>, vector<1x1x16xf32>
    %61 = vector.shape_cast %60 : vector<1x1x16xf32> to vector<1x16xf32>
    %62 = vector.shape_cast %59 : vector<1x16xf32> to vector<1x1x16xf32>
    tpu.vector_store %arg8[%c2_55, %c9_56, %c0_57], %62 {strides = array<i32>} : memref<4x10x16xf32, #tpu.memory_space<vmem>>, vector<1x1x16xf32>,
    %c0_58 = arith.constant 0 : index
    %c3 = arith.constant 3 : index
    %c0_59 = arith.constant 0 : index
    %c0_60 = arith.constant 0 : index
    %63 = vector.load %arg2[%c0_58, %c3, %c0_59, %c0_60] : memref<1x4x8x16xf32, #tpu.memory_space<vmem>>, vector<1x1x8x16xf32>
    %64 = vector.shape_cast %63 : vector<1x1x8x16xf32> to vector<8x16xf32>
    %c3_61 = arith.constant 3 : index
    %c1_62 = arith.constant 1 : index
    %c0_63 = arith.constant 0 : index
    %65 = vector.load %arg8[%c3_61, %c1_62, %c0_63] : memref<4x10x16xf32, #tpu.memory_space<vmem>>, vector<1x8x16xf32>
    %66 = vector.shape_cast %65 : vector<1x8x16xf32> to vector<8x16xf32>
    %67 = vector.shape_cast %64 : vector<8x16xf32> to vector<1x8x16xf32>
    tpu.vector_store %arg8[%c3_61, %c1_62, %c0_63], %67 {strides = array<i32>} : memref<4x10x16xf32, #tpu.memory_space<vmem>>, vector<1x8x16xf32>,
    %c0_64 = arith.constant 0 : index
    %c3_65 = arith.constant 3 : index
    %c7_66 = arith.constant 7 : index
    %c0_67 = arith.constant 0 : index
    %68 = vector.load %arg3[%c0_64, %c3_65, %c7_66, %c0_67] : memref<1x4x8x16xf32, #tpu.memory_space<vmem>>, vector<1x1x1x16xf32>
    %69 = vector.shape_cast %68 : vector<1x1x1x16xf32> to vector<1x16xf32>
    %70 = vector.broadcast %2 : f32 to vector<1x16xf32>
    %71 = arith.mulf %69, %70 : vector<1x16xf32>
    %c3_68 = arith.constant 3 : index
    %c0_69 = arith.constant 0 : index
    %c0_70 = arith.constant 0 : index
    %72 = vector.load %arg8[%c3_68, %c0_69, %c0_70] : memref<4x10x16xf32, #tpu.memory_space<vmem>>, vector<1x1x16xf32>
    %73 = vector.shape_cast %72 : vector<1x1x16xf32> to vector<1x16xf32>
    %74 = vector.shape_cast %71 : vector<1x16xf32> to vector<1x1x16xf32>
    tpu.vector_store %arg8[%c3_68, %c0_69, %c0_70], %74 {strides = array<i32>} : memref<4x10x16xf32, #tpu.memory_space<vmem>>, vector<1x1x16xf32>,
    %c0_71 = arith.constant 0 : index
    %c3_72 = arith.constant 3 : index
    %c0_73 = arith.constant 0 : index
    %c0_74 = arith.constant 0 : index
    %75 = vector.load %arg4[%c0_71, %c3_72, %c0_73, %c0_74] : memref<1x4x8x16xf32, #tpu.memory_space<vmem>>, vector<1x1x1x16xf32>
    %76 = vector.shape_cast %75 : vector<1x1x1x16xf32> to vector<1x16xf32>
    %77 = vector.broadcast %5 : f32 to vector<1x16xf32>
    %78 = arith.mulf %76, %77 : vector<1x16xf32>
    %c3_75 = arith.constant 3 : index
    %c9_76 = arith.constant 9 : index
    %c0_77 = arith.constant 0 : index
    %79 = vector.load %arg8[%c3_75, %c9_76, %c0_77] : memref<4x10x16xf32, #tpu.memory_space<vmem>>, vector<1x1x16xf32>
    %80 = vector.shape_cast %79 : vector<1x1x16xf32> to vector<1x16xf32>
    %81 = vector.shape_cast %78 : vector<1x16xf32> to vector<1x1x16xf32>
    tpu.vector_store %arg8[%c3_75, %c9_76, %c0_77], %81 {strides = array<i32>} : memref<4x10x16xf32, #tpu.memory_space<vmem>>, vector<1x1x16xf32>,
    %c0_78 = arith.constant 0 : index
    %c0_79 = arith.constant 0 : index
    %c0_80 = arith.constant 0 : index
    %82 = vector.load %arg8[%c0_78, %c0_79, %c0_80] : memref<4x10x16xf32, #tpu.memory_space<vmem>>, vector<1x8x16xf32>
    %83 = vector.shape_cast %82 : vector<1x8x16xf32> to vector<8x16xf32>
    %c0_81 = arith.constant 0 : index
    %84 = memref.load %arg5[%c0_81] : memref<72xf32, #tpu.memory_space<smem>>
    %85 = vector.broadcast %84 : f32 to vector<8x16xf32>
    %86 = arith.mulf %85, %83 : vector<8x16xf32>
    %c1_82 = arith.constant 1 : index
    %87 = memref.load %arg5[%c1_82] : memref<72xf32, #tpu.memory_space<smem>>
    %88 = vector.broadcast %87 : f32 to vector<8x16xf32>
    %89 = arith.mulf %88, %83 : vector<8x16xf32>
    %c2_83 = arith.constant 2 : index
    %90 = memref.load %arg5[%c2_83] : memref<72xf32, #tpu.memory_space<smem>>
    %91 = vector.broadcast %90 : f32 to vector<8x16xf32>
    %92 = arith.mulf %91, %83 : vector<8x16xf32>
    %c36 = arith.constant 36 : index
    %93 = memref.load %arg5[%c36] : memref<72xf32, #tpu.memory_space<smem>>
    %94 = vector.broadcast %93 : f32 to vector<8x16xf32>
    %95 = arith.mulf %94, %83 : vector<8x16xf32>
    %c37 = arith.constant 37 : index
    %96 = memref.load %arg5[%c37] : memref<72xf32, #tpu.memory_space<smem>>
    %97 = vector.broadcast %96 : f32 to vector<8x16xf32>
    %98 = arith.mulf %97, %83 : vector<8x16xf32>
    %c38 = arith.constant 38 : index
    %99 = memref.load %arg5[%c38] : memref<72xf32, #tpu.memory_space<smem>>
    %100 = vector.broadcast %99 : f32 to vector<8x16xf32>
    %101 = arith.mulf %100, %83 : vector<8x16xf32>
    %c0_84 = arith.constant 0 : index
    %c1_85 = arith.constant 1 : index
    %c0_86 = arith.constant 0 : index
    %102 = vector.load %arg8[%c0_84, %c1_85, %c0_86] : memref<4x10x16xf32, #tpu.memory_space<vmem>>, vector<1x8x16xf32>
    %103 = vector.shape_cast %102 : vector<1x8x16xf32> to vector<8x16xf32>
    %c3_87 = arith.constant 3 : index
    %104 = memref.load %arg5[%c3_87] : memref<72xf32, #tpu.memory_space<smem>>
    %105 = vector.broadcast %104 : f32 to vector<8x16xf32>
    %106 = arith.mulf %105, %103 : vector<8x16xf32>
    %107 = arith.addf %86, %106 : vector<8x16xf32>
    %c4 = arith.constant 4 : index
    %108 = memref.load %arg5[%c4] : memref<72xf32, #tpu.memory_space<smem>>
    %109 = vector.broadcast %108 : f32 to vector<8x16xf32>
    %110 = arith.mulf %109, %103 : vector<8x16xf32>
    %111 = arith.addf %89, %110 : vector<8x16xf32>
    %c5 = arith.constant 5 : index
    %112 = memref.load %arg5[%c5] : memref<72xf32, #tpu.memory_space<smem>>
    %113 = vector.broadcast %112 : f32 to vector<8x16xf32>
    %114 = arith.mulf %113, %103 : vector<8x16xf32>
    %115 = arith.addf %92, %114 : vector<8x16xf32>
    %c39 = arith.constant 39 : index
    %116 = memref.load %arg5[%c39] : memref<72xf32, #tpu.memory_space<smem>>
    %117 = vector.broadcast %116 : f32 to vector<8x16xf32>
    %118 = arith.mulf %117, %103 : vector<8x16xf32>
    %119 = arith.addf %95, %118 : vector<8x16xf32>
    %c40 = arith.constant 40 : index
    %120 = memref.load %arg5[%c40] : memref<72xf32, #tpu.memory_space<smem>>
    %121 = vector.broadcast %120 : f32 to vector<8x16xf32>
    %122 = arith.mulf %121, %103 : vector<8x16xf32>
    %123 = arith.addf %98, %122 : vector<8x16xf32>
    %c41 = arith.constant 41 : index
    %124 = memref.load %arg5[%c41] : memref<72xf32, #tpu.memory_space<smem>>
    %125 = vector.broadcast %124 : f32 to vector<8x16xf32>
    %126 = arith.mulf %125, %103 : vector<8x16xf32>
    %127 = arith.addf %101, %126 : vector<8x16xf32>
    %c0_88 = arith.constant 0 : index
    %c2_89 = arith.constant 2 : index
    %c0_90 = arith.constant 0 : index
    %128 = vector.load %arg8[%c0_88, %c2_89, %c0_90] : memref<4x10x16xf32, #tpu.memory_space<vmem>>, vector<1x8x16xf32>
    %129 = vector.shape_cast %128 : vector<1x8x16xf32> to vector<8x16xf32>
    %c6 = arith.constant 6 : index
    %130 = memref.load %arg5[%c6] : memref<72xf32, #tpu.memory_space<smem>>
    %131 = vector.broadcast %130 : f32 to vector<8x16xf32>
    %132 = arith.mulf %131, %129 : vector<8x16xf32>
    %133 = arith.addf %107, %132 : vector<8x16xf32>
    %c7_91 = arith.constant 7 : index
    %134 = memref.load %arg5[%c7_91] : memref<72xf32, #tpu.memory_space<smem>>
    %135 = vector.broadcast %134 : f32 to vector<8x16xf32>
    %136 = arith.mulf %135, %129 : vector<8x16xf32>
    %137 = arith.addf %111, %136 : vector<8x16xf32>
    %c8 = arith.constant 8 : index
    %138 = memref.load %arg5[%c8] : memref<72xf32, #tpu.memory_space<smem>>
    %139 = vector.broadcast %138 : f32 to vector<8x16xf32>
    %140 = arith.mulf %139, %129 : vector<8x16xf32>
    %141 = arith.addf %115, %140 : vector<8x16xf32>
    %c42 = arith.constant 42 : index
    %142 = memref.load %arg5[%c42] : memref<72xf32, #tpu.memory_space<smem>>
    %143 = vector.broadcast %142 : f32 to vector<8x16xf32>
    %144 = arith.mulf %143, %129 : vector<8x16xf32>
    %145 = arith.addf %119, %144 : vector<8x16xf32>
    %c43 = arith.constant 43 : index
    %146 = memref.load %arg5[%c43] : memref<72xf32, #tpu.memory_space<smem>>
    %147 = vector.broadcast %146 : f32 to vector<8x16xf32>
    %148 = arith.mulf %147, %129 : vector<8x16xf32>
    %149 = arith.addf %123, %148 : vector<8x16xf32>
    %c44 = arith.constant 44 : index
    %150 = memref.load %arg5[%c44] : memref<72xf32, #tpu.memory_space<smem>>
    %151 = vector.broadcast %150 : f32 to vector<8x16xf32>
    %152 = arith.mulf %151, %129 : vector<8x16xf32>
    %153 = arith.addf %127, %152 : vector<8x16xf32>
    %c1_92 = arith.constant 1 : index
    %c0_93 = arith.constant 0 : index
    %c0_94 = arith.constant 0 : index
    %154 = vector.load %arg8[%c1_92, %c0_93, %c0_94] : memref<4x10x16xf32, #tpu.memory_space<vmem>>, vector<1x8x16xf32>
    %155 = vector.shape_cast %154 : vector<1x8x16xf32> to vector<8x16xf32>
    %c9_95 = arith.constant 9 : index
    %156 = memref.load %arg5[%c9_95] : memref<72xf32, #tpu.memory_space<smem>>
    %157 = vector.broadcast %156 : f32 to vector<8x16xf32>
    %158 = arith.mulf %157, %155 : vector<8x16xf32>
    %159 = arith.addf %133, %158 : vector<8x16xf32>
    %c10 = arith.constant 10 : index
    %160 = memref.load %arg5[%c10] : memref<72xf32, #tpu.memory_space<smem>>
    %161 = vector.broadcast %160 : f32 to vector<8x16xf32>
    %162 = arith.mulf %161, %155 : vector<8x16xf32>
    %163 = arith.addf %137, %162 : vector<8x16xf32>
    %c11 = arith.constant 11 : index
    %164 = memref.load %arg5[%c11] : memref<72xf32, #tpu.memory_space<smem>>
    %165 = vector.broadcast %164 : f32 to vector<8x16xf32>
    %166 = arith.mulf %165, %155 : vector<8x16xf32>
    %167 = arith.addf %141, %166 : vector<8x16xf32>
    %c45 = arith.constant 45 : index
    %168 = memref.load %arg5[%c45] : memref<72xf32, #tpu.memory_space<smem>>
    %169 = vector.broadcast %168 : f32 to vector<8x16xf32>
    %170 = arith.mulf %169, %155 : vector<8x16xf32>
    %171 = arith.addf %145, %170 : vector<8x16xf32>
    %c46 = arith.constant 46 : index
    %172 = memref.load %arg5[%c46] : memref<72xf32, #tpu.memory_space<smem>>
    %173 = vector.broadcast %172 : f32 to vector<8x16xf32>
    %174 = arith.mulf %173, %155 : vector<8x16xf32>
    %175 = arith.addf %149, %174 : vector<8x16xf32>
    %c47 = arith.constant 47 : index
    %176 = memref.load %arg5[%c47] : memref<72xf32, #tpu.memory_space<smem>>
    %177 = vector.broadcast %176 : f32 to vector<8x16xf32>
    %178 = arith.mulf %177, %155 : vector<8x16xf32>
    %179 = arith.addf %153, %178 : vector<8x16xf32>
    %c1_96 = arith.constant 1 : index
    %c1_97 = arith.constant 1 : index
    %c0_98 = arith.constant 0 : index
    %180 = vector.load %arg8[%c1_96, %c1_97, %c0_98] : memref<4x10x16xf32, #tpu.memory_space<vmem>>, vector<1x8x16xf32>
    %181 = vector.shape_cast %180 : vector<1x8x16xf32> to vector<8x16xf32>
    %c12 = arith.constant 12 : index
    %182 = memref.load %arg5[%c12] : memref<72xf32, #tpu.memory_space<smem>>
    %183 = vector.broadcast %182 : f32 to vector<8x16xf32>
    %184 = arith.mulf %183, %181 : vector<8x16xf32>
    %185 = arith.addf %159, %184 : vector<8x16xf32>
    %c13 = arith.constant 13 : index
    %186 = memref.load %arg5[%c13] : memref<72xf32, #tpu.memory_space<smem>>
    %187 = vector.broadcast %186 : f32 to vector<8x16xf32>
    %188 = arith.mulf %187, %181 : vector<8x16xf32>
    %189 = arith.addf %163, %188 : vector<8x16xf32>
    %c14 = arith.constant 14 : index
    %190 = memref.load %arg5[%c14] : memref<72xf32, #tpu.memory_space<smem>>
    %191 = vector.broadcast %190 : f32 to vector<8x16xf32>
    %192 = arith.mulf %191, %181 : vector<8x16xf32>
    %193 = arith.addf %167, %192 : vector<8x16xf32>
    %c48 = arith.constant 48 : index
    %194 = memref.load %arg5[%c48] : memref<72xf32, #tpu.memory_space<smem>>
    %195 = vector.broadcast %194 : f32 to vector<8x16xf32>
    %196 = arith.mulf %195, %181 : vector<8x16xf32>
    %197 = arith.addf %171, %196 : vector<8x16xf32>
    %c49 = arith.constant 49 : index
    %198 = memref.load %arg5[%c49] : memref<72xf32, #tpu.memory_space<smem>>
    %199 = vector.broadcast %198 : f32 to vector<8x16xf32>
    %200 = arith.mulf %199, %181 : vector<8x16xf32>
    %201 = arith.addf %175, %200 : vector<8x16xf32>
    %c50 = arith.constant 50 : index
    %202 = memref.load %arg5[%c50] : memref<72xf32, #tpu.memory_space<smem>>
    %203 = vector.broadcast %202 : f32 to vector<8x16xf32>
    %204 = arith.mulf %203, %181 : vector<8x16xf32>
    %205 = arith.addf %179, %204 : vector<8x16xf32>
    %c1_99 = arith.constant 1 : index
    %c2_100 = arith.constant 2 : index
    %c0_101 = arith.constant 0 : index
    %206 = vector.load %arg8[%c1_99, %c2_100, %c0_101] : memref<4x10x16xf32, #tpu.memory_space<vmem>>, vector<1x8x16xf32>
    %207 = vector.shape_cast %206 : vector<1x8x16xf32> to vector<8x16xf32>
    %c15 = arith.constant 15 : index
    %208 = memref.load %arg5[%c15] : memref<72xf32, #tpu.memory_space<smem>>
    %209 = vector.broadcast %208 : f32 to vector<8x16xf32>
    %210 = arith.mulf %209, %207 : vector<8x16xf32>
    %211 = arith.addf %185, %210 : vector<8x16xf32>
    %c16 = arith.constant 16 : index
    %212 = memref.load %arg5[%c16] : memref<72xf32, #tpu.memory_space<smem>>
    %213 = vector.broadcast %212 : f32 to vector<8x16xf32>
    %214 = arith.mulf %213, %207 : vector<8x16xf32>
    %215 = arith.addf %189, %214 : vector<8x16xf32>
    %c17 = arith.constant 17 : index
    %216 = memref.load %arg5[%c17] : memref<72xf32, #tpu.memory_space<smem>>
    %217 = vector.broadcast %216 : f32 to vector<8x16xf32>
    %218 = arith.mulf %217, %207 : vector<8x16xf32>
    %219 = arith.addf %193, %218 : vector<8x16xf32>
    %c51 = arith.constant 51 : index
    %220 = memref.load %arg5[%c51] : memref<72xf32, #tpu.memory_space<smem>>
    %221 = vector.broadcast %220 : f32 to vector<8x16xf32>
    %222 = arith.mulf %221, %207 : vector<8x16xf32>
    %223 = arith.addf %197, %222 : vector<8x16xf32>
    %c52 = arith.constant 52 : index
    %224 = memref.load %arg5[%c52] : memref<72xf32, #tpu.memory_space<smem>>
    %225 = vector.broadcast %224 : f32 to vector<8x16xf32>
    %226 = arith.mulf %225, %207 : vector<8x16xf32>
    %227 = arith.addf %201, %226 : vector<8x16xf32>
    %c53 = arith.constant 53 : index
    %228 = memref.load %arg5[%c53] : memref<72xf32, #tpu.memory_space<smem>>
    %229 = vector.broadcast %228 : f32 to vector<8x16xf32>
    %230 = arith.mulf %229, %207 : vector<8x16xf32>
    %231 = arith.addf %205, %230 : vector<8x16xf32>
    %c2_102 = arith.constant 2 : index
    %c0_103 = arith.constant 0 : index
    %c0_104 = arith.constant 0 : index
    %232 = vector.load %arg8[%c2_102, %c0_103, %c0_104] : memref<4x10x16xf32, #tpu.memory_space<vmem>>, vector<1x8x16xf32>
    %233 = vector.shape_cast %232 : vector<1x8x16xf32> to vector<8x16xf32>
    %c18 = arith.constant 18 : index
    %234 = memref.load %arg5[%c18] : memref<72xf32, #tpu.memory_space<smem>>
    %235 = vector.broadcast %234 : f32 to vector<8x16xf32>
    %236 = arith.mulf %235, %233 : vector<8x16xf32>
    %237 = arith.addf %211, %236 : vector<8x16xf32>
    %c19 = arith.constant 19 : index
    %238 = memref.load %arg5[%c19] : memref<72xf32, #tpu.memory_space<smem>>
    %239 = vector.broadcast %238 : f32 to vector<8x16xf32>
    %240 = arith.mulf %239, %233 : vector<8x16xf32>
    %241 = arith.addf %215, %240 : vector<8x16xf32>
    %c20 = arith.constant 20 : index
    %242 = memref.load %arg5[%c20] : memref<72xf32, #tpu.memory_space<smem>>
    %243 = vector.broadcast %242 : f32 to vector<8x16xf32>
    %244 = arith.mulf %243, %233 : vector<8x16xf32>
    %245 = arith.addf %219, %244 : vector<8x16xf32>
    %c54 = arith.constant 54 : index
    %246 = memref.load %arg5[%c54] : memref<72xf32, #tpu.memory_space<smem>>
    %247 = vector.broadcast %246 : f32 to vector<8x16xf32>
    %248 = arith.mulf %247, %233 : vector<8x16xf32>
    %249 = arith.addf %223, %248 : vector<8x16xf32>
    %c55 = arith.constant 55 : index
    %250 = memref.load %arg5[%c55] : memref<72xf32, #tpu.memory_space<smem>>
    %251 = vector.broadcast %250 : f32 to vector<8x16xf32>
    %252 = arith.mulf %251, %233 : vector<8x16xf32>
    %253 = arith.addf %227, %252 : vector<8x16xf32>
    %c56 = arith.constant 56 : index
    %254 = memref.load %arg5[%c56] : memref<72xf32, #tpu.memory_space<smem>>
    %255 = vector.broadcast %254 : f32 to vector<8x16xf32>
    %256 = arith.mulf %255, %233 : vector<8x16xf32>
    %257 = arith.addf %231, %256 : vector<8x16xf32>
    %c2_105 = arith.constant 2 : index
    %c1_106 = arith.constant 1 : index
    %c0_107 = arith.constant 0 : index
    %258 = vector.load %arg8[%c2_105, %c1_106, %c0_107] : memref<4x10x16xf32, #tpu.memory_space<vmem>>, vector<1x8x16xf32>
    %259 = vector.shape_cast %258 : vector<1x8x16xf32> to vector<8x16xf32>
    %c21 = arith.constant 21 : index
    %260 = memref.load %arg5[%c21] : memref<72xf32, #tpu.memory_space<smem>>
    %261 = vector.broadcast %260 : f32 to vector<8x16xf32>
    %262 = arith.mulf %261, %259 : vector<8x16xf32>
    %263 = arith.addf %237, %262 : vector<8x16xf32>
    %c22 = arith.constant 22 : index
    %264 = memref.load %arg5[%c22] : memref<72xf32, #tpu.memory_space<smem>>
    %265 = vector.broadcast %264 : f32 to vector<8x16xf32>
    %266 = arith.mulf %265, %259 : vector<8x16xf32>
    %267 = arith.addf %241, %266 : vector<8x16xf32>
    %c23 = arith.constant 23 : index
    %268 = memref.load %arg5[%c23] : memref<72xf32, #tpu.memory_space<smem>>
    %269 = vector.broadcast %268 : f32 to vector<8x16xf32>
    %270 = arith.mulf %269, %259 : vector<8x16xf32>
    %271 = arith.addf %245, %270 : vector<8x16xf32>
    %c57 = arith.constant 57 : index
    %272 = memref.load %arg5[%c57] : memref<72xf32, #tpu.memory_space<smem>>
    %273 = vector.broadcast %272 : f32 to vector<8x16xf32>
    %274 = arith.mulf %273, %259 : vector<8x16xf32>
    %275 = arith.addf %249, %274 : vector<8x16xf32>
    %c58 = arith.constant 58 : index
    %276 = memref.load %arg5[%c58] : memref<72xf32, #tpu.memory_space<smem>>
    %277 = vector.broadcast %276 : f32 to vector<8x16xf32>
    %278 = arith.mulf %277, %259 : vector<8x16xf32>
    %279 = arith.addf %253, %278 : vector<8x16xf32>
    %c59 = arith.constant 59 : index
    %280 = memref.load %arg5[%c59] : memref<72xf32, #tpu.memory_space<smem>>
    %281 = vector.broadcast %280 : f32 to vector<8x16xf32>
    %282 = arith.mulf %281, %259 : vector<8x16xf32>
    %283 = arith.addf %257, %282 : vector<8x16xf32>
    %c2_108 = arith.constant 2 : index
    %c2_109 = arith.constant 2 : index
    %c0_110 = arith.constant 0 : index
    %284 = vector.load %arg8[%c2_108, %c2_109, %c0_110] : memref<4x10x16xf32, #tpu.memory_space<vmem>>, vector<1x8x16xf32>
    %285 = vector.shape_cast %284 : vector<1x8x16xf32> to vector<8x16xf32>
    %c24 = arith.constant 24 : index
    %286 = memref.load %arg5[%c24] : memref<72xf32, #tpu.memory_space<smem>>
    %287 = vector.broadcast %286 : f32 to vector<8x16xf32>
    %288 = arith.mulf %287, %285 : vector<8x16xf32>
    %289 = arith.addf %263, %288 : vector<8x16xf32>
    %c25 = arith.constant 25 : index
    %290 = memref.load %arg5[%c25] : memref<72xf32, #tpu.memory_space<smem>>
    %291 = vector.broadcast %290 : f32 to vector<8x16xf32>
    %292 = arith.mulf %291, %285 : vector<8x16xf32>
    %293 = arith.addf %267, %292 : vector<8x16xf32>
    %c26 = arith.constant 26 : index
    %294 = memref.load %arg5[%c26] : memref<72xf32, #tpu.memory_space<smem>>
    %295 = vector.broadcast %294 : f32 to vector<8x16xf32>
    %296 = arith.mulf %295, %285 : vector<8x16xf32>
    %297 = arith.addf %271, %296 : vector<8x16xf32>
    %c60 = arith.constant 60 : index
    %298 = memref.load %arg5[%c60] : memref<72xf32, #tpu.memory_space<smem>>
    %299 = vector.broadcast %298 : f32 to vector<8x16xf32>
    %300 = arith.mulf %299, %285 : vector<8x16xf32>
    %301 = arith.addf %275, %300 : vector<8x16xf32>
    %c61 = arith.constant 61 : index
    %302 = memref.load %arg5[%c61] : memref<72xf32, #tpu.memory_space<smem>>
    %303 = vector.broadcast %302 : f32 to vector<8x16xf32>
    %304 = arith.mulf %303, %285 : vector<8x16xf32>
    %305 = arith.addf %279, %304 : vector<8x16xf32>
    %c62 = arith.constant 62 : index
    %306 = memref.load %arg5[%c62] : memref<72xf32, #tpu.memory_space<smem>>
    %307 = vector.broadcast %306 : f32 to vector<8x16xf32>
    %308 = arith.mulf %307, %285 : vector<8x16xf32>
    %309 = arith.addf %283, %308 : vector<8x16xf32>
    %c3_111 = arith.constant 3 : index
    %c0_112 = arith.constant 0 : index
    %c0_113 = arith.constant 0 : index
    %310 = vector.load %arg8[%c3_111, %c0_112, %c0_113] : memref<4x10x16xf32, #tpu.memory_space<vmem>>, vector<1x8x16xf32>
    %311 = vector.shape_cast %310 : vector<1x8x16xf32> to vector<8x16xf32>
    %c27 = arith.constant 27 : index
    %312 = memref.load %arg5[%c27] : memref<72xf32, #tpu.memory_space<smem>>
    %313 = vector.broadcast %312 : f32 to vector<8x16xf32>
    %314 = arith.mulf %313, %311 : vector<8x16xf32>
    %315 = arith.addf %289, %314 : vector<8x16xf32>
    %c28 = arith.constant 28 : index
    %316 = memref.load %arg5[%c28] : memref<72xf32, #tpu.memory_space<smem>>
    %317 = vector.broadcast %316 : f32 to vector<8x16xf32>
    %318 = arith.mulf %317, %311 : vector<8x16xf32>
    %319 = arith.addf %293, %318 : vector<8x16xf32>
    %c29 = arith.constant 29 : index
    %320 = memref.load %arg5[%c29] : memref<72xf32, #tpu.memory_space<smem>>
    %321 = vector.broadcast %320 : f32 to vector<8x16xf32>
    %322 = arith.mulf %321, %311 : vector<8x16xf32>
    %323 = arith.addf %297, %322 : vector<8x16xf32>
    %c63 = arith.constant 63 : index
    %324 = memref.load %arg5[%c63] : memref<72xf32, #tpu.memory_space<smem>>
    %325 = vector.broadcast %324 : f32 to vector<8x16xf32>
    %326 = arith.mulf %325, %311 : vector<8x16xf32>
    %327 = arith.addf %301, %326 : vector<8x16xf32>
    %c64 = arith.constant 64 : index
    %328 = memref.load %arg5[%c64] : memref<72xf32, #tpu.memory_space<smem>>
    %329 = vector.broadcast %328 : f32 to vector<8x16xf32>
    %330 = arith.mulf %329, %311 : vector<8x16xf32>
    %331 = arith.addf %305, %330 : vector<8x16xf32>
    %c65 = arith.constant 65 : index
    %332 = memref.load %arg5[%c65] : memref<72xf32, #tpu.memory_space<smem>>
    %333 = vector.broadcast %332 : f32 to vector<8x16xf32>
    %334 = arith.mulf %333, %311 : vector<8x16xf32>
    %335 = arith.addf %309, %334 : vector<8x16xf32>
    %c3_114 = arith.constant 3 : index
    %c1_115 = arith.constant 1 : index
    %c0_116 = arith.constant 0 : index
    %336 = vector.load %arg8[%c3_114, %c1_115, %c0_116] : memref<4x10x16xf32, #tpu.memory_space<vmem>>, vector<1x8x16xf32>
    %337 = vector.shape_cast %336 : vector<1x8x16xf32> to vector<8x16xf32>
    %c30 = arith.constant 30 : index
    %338 = memref.load %arg5[%c30] : memref<72xf32, #tpu.memory_space<smem>>
    %339 = vector.broadcast %338 : f32 to vector<8x16xf32>
    %340 = arith.mulf %339, %337 : vector<8x16xf32>
    %341 = arith.addf %315, %340 : vector<8x16xf32>
    %c31 = arith.constant 31 : index
    %342 = memref.load %arg5[%c31] : memref<72xf32, #tpu.memory_space<smem>>
    %343 = vector.broadcast %342 : f32 to vector<8x16xf32>
    %344 = arith.mulf %343, %337 : vector<8x16xf32>
    %345 = arith.addf %319, %344 : vector<8x16xf32>
    %c32 = arith.constant 32 : index
    %346 = memref.load %arg5[%c32] : memref<72xf32, #tpu.memory_space<smem>>
    %347 = vector.broadcast %346 : f32 to vector<8x16xf32>
    %348 = arith.mulf %347, %337 : vector<8x16xf32>
    %349 = arith.addf %323, %348 : vector<8x16xf32>
    %c66 = arith.constant 66 : index
    %350 = memref.load %arg5[%c66] : memref<72xf32, #tpu.memory_space<smem>>
    %351 = vector.broadcast %350 : f32 to vector<8x16xf32>
    %352 = arith.mulf %351, %337 : vector<8x16xf32>
    %353 = arith.addf %327, %352 : vector<8x16xf32>
    %c67 = arith.constant 67 : index
    %354 = memref.load %arg5[%c67] : memref<72xf32, #tpu.memory_space<smem>>
    %355 = vector.broadcast %354 : f32 to vector<8x16xf32>
    %356 = arith.mulf %355, %337 : vector<8x16xf32>
    %357 = arith.addf %331, %356 : vector<8x16xf32>
    %c68 = arith.constant 68 : index
    %358 = memref.load %arg5[%c68] : memref<72xf32, #tpu.memory_space<smem>>
    %359 = vector.broadcast %358 : f32 to vector<8x16xf32>
    %360 = arith.mulf %359, %337 : vector<8x16xf32>
    %361 = arith.addf %335, %360 : vector<8x16xf32>
    %c3_117 = arith.constant 3 : index
    %c2_118 = arith.constant 2 : index
    %c0_119 = arith.constant 0 : index
    %362 = vector.load %arg8[%c3_117, %c2_118, %c0_119] : memref<4x10x16xf32, #tpu.memory_space<vmem>>, vector<1x8x16xf32>
    %363 = vector.shape_cast %362 : vector<1x8x16xf32> to vector<8x16xf32>
    %c33 = arith.constant 33 : index
    %364 = memref.load %arg5[%c33] : memref<72xf32, #tpu.memory_space<smem>>
    %365 = vector.broadcast %364 : f32 to vector<8x16xf32>
    %366 = arith.mulf %365, %363 : vector<8x16xf32>
    %367 = arith.addf %341, %366 : vector<8x16xf32>
    %c34 = arith.constant 34 : index
    %368 = memref.load %arg5[%c34] : memref<72xf32, #tpu.memory_space<smem>>
    %369 = vector.broadcast %368 : f32 to vector<8x16xf32>
    %370 = arith.mulf %369, %363 : vector<8x16xf32>
    %371 = arith.addf %345, %370 : vector<8x16xf32>
    %c35 = arith.constant 35 : index
    %372 = memref.load %arg5[%c35] : memref<72xf32, #tpu.memory_space<smem>>
    %373 = vector.broadcast %372 : f32 to vector<8x16xf32>
    %374 = arith.mulf %373, %363 : vector<8x16xf32>
    %375 = arith.addf %349, %374 : vector<8x16xf32>
    %c69 = arith.constant 69 : index
    %376 = memref.load %arg5[%c69] : memref<72xf32, #tpu.memory_space<smem>>
    %377 = vector.broadcast %376 : f32 to vector<8x16xf32>
    %378 = arith.mulf %377, %363 : vector<8x16xf32>
    %379 = arith.addf %353, %378 : vector<8x16xf32>
    %c70 = arith.constant 70 : index
    %380 = memref.load %arg5[%c70] : memref<72xf32, #tpu.memory_space<smem>>
    %381 = vector.broadcast %380 : f32 to vector<8x16xf32>
    %382 = arith.mulf %381, %363 : vector<8x16xf32>
    %383 = arith.addf %357, %382 : vector<8x16xf32>
    %c71 = arith.constant 71 : index
    %384 = memref.load %arg5[%c71] : memref<72xf32, #tpu.memory_space<smem>>
    %385 = vector.broadcast %384 : f32 to vector<8x16xf32>
    %386 = arith.mulf %385, %363 : vector<8x16xf32>
    %387 = arith.addf %361, %386 : vector<8x16xf32>
    %cst = arith.constant 0.000000e+00 : f32
    %388 = vector.broadcast %cst : f32 to vector<8x1xf32>
    %c0_120 = arith.constant 0 : index
    %c0_121 = arith.constant 0 : index
    %c0_122 = arith.constant 0 : index
    %389 = vector.load %arg9[%c0_120, %c0_121, %c0_122] : memref<2x8x17xf32, #tpu.memory_space<vmem>>, vector<1x8x1xf32>
    %390 = vector.shape_cast %389 : vector<1x8x1xf32> to vector<8x1xf32>
    %391 = vector.shape_cast %388 : vector<8x1xf32> to vector<1x8x1xf32>
    tpu.vector_store %arg9[%c0_120, %c0_121, %c0_122], %391 {strides = array<i32>} : memref<2x8x17xf32, #tpu.memory_space<vmem>>, vector<1x8x1xf32>,
    %cst_123 = arith.constant 0.000000e+00 : f32
    %392 = vector.broadcast %cst_123 : f32 to vector<8x1xf32>
    %c1_124 = arith.constant 1 : index
    %c0_125 = arith.constant 0 : index
    %c16_126 = arith.constant 16 : index
    %393 = vector.load %arg9[%c1_124, %c0_125, %c16_126] : memref<2x8x17xf32, #tpu.memory_space<vmem>>, vector<1x8x1xf32>
    %394 = vector.shape_cast %393 : vector<1x8x1xf32> to vector<8x1xf32>
    %395 = vector.shape_cast %392 : vector<8x1xf32> to vector<1x8x1xf32>
    tpu.vector_store %arg9[%c1_124, %c0_125, %c16_126], %395 {strides = array<i32>} : memref<2x8x17xf32, #tpu.memory_space<vmem>>, vector<1x8x1xf32>,
    %c0_127 = arith.constant 0 : index
    %c0_128 = arith.constant 0 : index
    %c1_129 = arith.constant 1 : index
    %396 = vector.load %arg9[%c0_127, %c0_128, %c1_129] : memref<2x8x17xf32, #tpu.memory_space<vmem>>, vector<1x8x16xf32>
    %397 = vector.shape_cast %396 : vector<1x8x16xf32> to vector<8x16xf32>
    %398 = vector.shape_cast %367 : vector<8x16xf32> to vector<1x8x16xf32>
    tpu.vector_store %arg9[%c0_127, %c0_128, %c1_129], %398 {strides = array<i32>} : memref<2x8x17xf32, #tpu.memory_space<vmem>>, vector<1x8x16xf32>,
    %c1_130 = arith.constant 1 : index
    %c0_131 = arith.constant 0 : index
    %c0_132 = arith.constant 0 : index
    %399 = vector.load %arg9[%c1_130, %c0_131, %c0_132] : memref<2x8x17xf32, #tpu.memory_space<vmem>>, vector<1x8x16xf32>
    %400 = vector.shape_cast %399 : vector<1x8x16xf32> to vector<8x16xf32>
    %401 = vector.shape_cast %375 : vector<8x16xf32> to vector<1x8x16xf32>
    tpu.vector_store %arg9[%c1_130, %c0_131, %c0_132], %401 {strides = array<i32>} : memref<2x8x17xf32, #tpu.memory_space<vmem>>, vector<1x8x16xf32>,
    %c0_133 = arith.constant 0 : index
    %c0_134 = arith.constant 0 : index
    %c0_135 = arith.constant 0 : index
    %402 = vector.load %arg9[%c0_133, %c0_134, %c0_135] : memref<2x8x17xf32, #tpu.memory_space<vmem>>, vector<1x8x16xf32>
    %403 = vector.shape_cast %402 : vector<1x8x16xf32> to vector<8x16xf32>
    %404 = arith.addf %371, %403 : vector<8x16xf32>
    %c1_136 = arith.constant 1 : index
    %c0_137 = arith.constant 0 : index
    %c1_138 = arith.constant 1 : index
    %405 = vector.load %arg9[%c1_136, %c0_137, %c1_138] : memref<2x8x17xf32, #tpu.memory_space<vmem>>, vector<1x8x16xf32>
    %406 = vector.shape_cast %405 : vector<1x8x16xf32> to vector<8x16xf32>
    %407 = arith.addf %404, %406 : vector<8x16xf32>
    %c0_139 = arith.constant 0 : index
    %c0_140 = arith.constant 0 : index
    %c0_141 = arith.constant 0 : index
    %c0_142 = arith.constant 0 : index
    %408 = vector.load %arg6[%c0_139, %c0_140, %c0_141, %c0_142] : memref<1x2x8x16xf32, #tpu.memory_space<vmem>>, vector<1x1x8x16xf32>
    %409 = vector.shape_cast %408 : vector<1x1x8x16xf32> to vector<8x16xf32>
    %410 = vector.shape_cast %407 : vector<8x16xf32> to vector<1x1x8x16xf32>
    tpu.vector_store %arg6[%c0_139, %c0_140, %c0_141, %c0_142], %410 {strides = array<i32>} : memref<1x2x8x16xf32, #tpu.memory_space<vmem>>, vector<1x1x8x16xf32>,
    %cst_143 = arith.constant dense<0.000000e+00> : vector<16xf32>
    %411 = vector.multi_reduction <add>, %407, %cst_143 [0] : vector<8x16xf32> to vector<16xf32>
    %412 = vector.shape_cast %411 : vector<16xf32> to vector<1x16xf32>
    %c0_144 = arith.constant 0 : index
    %c0_145 = arith.constant 0 : index
    %c0_146 = arith.constant 0 : index
    %c0_147 = arith.constant 0 : index
    %413 = vector.load %arg7[%c0_144, %c0_145, %c0_146, %c0_147] : memref<1x1x4x16xf32, #tpu.memory_space<vmem>>, vector<1x1x1x16xf32>
    %414 = vector.shape_cast %413 : vector<1x1x1x16xf32> to vector<1x16xf32>
    %415 = vector.shape_cast %412 : vector<1x16xf32> to vector<1x1x1x16xf32>
    tpu.vector_store %arg7[%c0_144, %c0_145, %c0_146, %c0_147], %415 {strides = array<i32>} : memref<1x1x4x16xf32, #tpu.memory_space<vmem>>, vector<1x1x1x16xf32>,
    %416 = arith.mulf %407, %407 : vector<8x16xf32>
    %cst_148 = arith.constant dense<0.000000e+00> : vector<16xf32>
    %417 = vector.multi_reduction <add>, %416, %cst_148 [0] : vector<8x16xf32> to vector<16xf32>
    %418 = vector.shape_cast %417 : vector<16xf32> to vector<1x16xf32>
    %c0_149 = arith.constant 0 : index
    %c0_150 = arith.constant 0 : index
    %c2_151 = arith.constant 2 : index
    %c0_152 = arith.constant 0 : index
    %419 = vector.load %arg7[%c0_149, %c0_150, %c2_151, %c0_152] : memref<1x1x4x16xf32, #tpu.memory_space<vmem>>, vector<1x1x1x16xf32>
    %420 = vector.shape_cast %419 : vector<1x1x1x16xf32> to vector<1x16xf32>
    %421 = vector.shape_cast %418 : vector<1x16xf32> to vector<1x1x1x16xf32>
    tpu.vector_store %arg7[%c0_149, %c0_150, %c2_151, %c0_152], %421 {strides = array<i32>} : memref<1x1x4x16xf32, #tpu.memory_space<vmem>>, vector<1x1x1x16xf32>,
    %c0_153 = arith.constant 0 : index
    %c0_154 = arith.constant 0 : index
    %c1_155 = arith.constant 1 : index
    %422 = vector.load %arg9[%c0_153, %c0_154, %c1_155] : memref<2x8x17xf32, #tpu.memory_space<vmem>>, vector<1x8x16xf32>
    %423 = vector.shape_cast %422 : vector<1x8x16xf32> to vector<8x16xf32>
    %424 = vector.shape_cast %379 : vector<8x16xf32> to vector<1x8x16xf32>
    tpu.vector_store %arg9[%c0_153, %c0_154, %c1_155], %424 {strides = array<i32>} : memref<2x8x17xf32, #tpu.memory_space<vmem>>, vector<1x8x16xf32>,
    %c1_156 = arith.constant 1 : index
    %c0_157 = arith.constant 0 : index
    %c0_158 = arith.constant 0 : index
    %425 = vector.load %arg9[%c1_156, %c0_157, %c0_158] : memref<2x8x17xf32, #tpu.memory_space<vmem>>, vector<1x8x16xf32>
    %426 = vector.shape_cast %425 : vector<1x8x16xf32> to vector<8x16xf32>
    %427 = vector.shape_cast %387 : vector<8x16xf32> to vector<1x8x16xf32>
    tpu.vector_store %arg9[%c1_156, %c0_157, %c0_158], %427 {strides = array<i32>} : memref<2x8x17xf32, #tpu.memory_space<vmem>>, vector<1x8x16xf32>,
    %c0_159 = arith.constant 0 : index
    %c0_160 = arith.constant 0 : index
    %c0_161 = arith.constant 0 : index
    %428 = vector.load %arg9[%c0_159, %c0_160, %c0_161] : memref<2x8x17xf32, #tpu.memory_space<vmem>>, vector<1x8x16xf32>
    %429 = vector.shape_cast %428 : vector<1x8x16xf32> to vector<8x16xf32>
    %430 = arith.addf %383, %429 : vector<8x16xf32>
    %c1_162 = arith.constant 1 : index
    %c0_163 = arith.constant 0 : index
    %c1_164 = arith.constant 1 : index
    %431 = vector.load %arg9[%c1_162, %c0_163, %c1_164] : memref<2x8x17xf32, #tpu.memory_space<vmem>>, vector<1x8x16xf32>
    %432 = vector.shape_cast %431 : vector<1x8x16xf32> to vector<8x16xf32>
    %433 = arith.addf %430, %432 : vector<8x16xf32>
    %c0_165 = arith.constant 0 : index
    %c1_166 = arith.constant 1 : index
    %c0_167 = arith.constant 0 : index
    %c0_168 = arith.constant 0 : index
    %434 = vector.load %arg6[%c0_165, %c1_166, %c0_167, %c0_168] : memref<1x2x8x16xf32, #tpu.memory_space<vmem>>, vector<1x1x8x16xf32>
    %435 = vector.shape_cast %434 : vector<1x1x8x16xf32> to vector<8x16xf32>
    %436 = vector.shape_cast %433 : vector<8x16xf32> to vector<1x1x8x16xf32>
    tpu.vector_store %arg6[%c0_165, %c1_166, %c0_167, %c0_168], %436 {strides = array<i32>} : memref<1x2x8x16xf32, #tpu.memory_space<vmem>>, vector<1x1x8x16xf32>,
    %cst_169 = arith.constant dense<0.000000e+00> : vector<16xf32>
    %437 = vector.multi_reduction <add>, %433, %cst_169 [0] : vector<8x16xf32> to vector<16xf32>
    %438 = vector.shape_cast %437 : vector<16xf32> to vector<1x16xf32>
    %c0_170 = arith.constant 0 : index
    %c0_171 = arith.constant 0 : index
    %c1_172 = arith.constant 1 : index
    %c0_173 = arith.constant 0 : index
    %439 = vector.load %arg7[%c0_170, %c0_171, %c1_172, %c0_173] : memref<1x1x4x16xf32, #tpu.memory_space<vmem>>, vector<1x1x1x16xf32>
    %440 = vector.shape_cast %439 : vector<1x1x1x16xf32> to vector<1x16xf32>
    %441 = vector.shape_cast %438 : vector<1x16xf32> to vector<1x1x1x16xf32>
    tpu.vector_store %arg7[%c0_170, %c0_171, %c1_172, %c0_173], %441 {strides = array<i32>} : memref<1x1x4x16xf32, #tpu.memory_space<vmem>>, vector<1x1x1x16xf32>,
    %442 = arith.mulf %433, %433 : vector<8x16xf32>
    %cst_174 = arith.constant dense<0.000000e+00> : vector<16xf32>
    %443 = vector.multi_reduction <add>, %442, %cst_174 [0] : vector<8x16xf32> to vector<16xf32>
    %444 = vector.shape_cast %443 : vector<16xf32> to vector<1x16xf32>
    %c0_175 = arith.constant 0 : index
    %c0_176 = arith.constant 0 : index
    %c3_177 = arith.constant 3 : index
    %c0_178 = arith.constant 0 : index
    %445 = vector.load %arg7[%c0_175, %c0_176, %c3_177, %c0_178] : memref<1x1x4x16xf32, #tpu.memory_space<vmem>>, vector<1x1x1x16xf32>
    %446 = vector.shape_cast %445 : vector<1x1x1x16xf32> to vector<1x16xf32>
    %447 = vector.shape_cast %444 : vector<1x16xf32> to vector<1x1x1x16xf32>
    tpu.vector_store %arg7[%c0_175, %c0_176, %c3_177, %c0_178], %447 {strides = array<i32>} : memref<1x1x4x16xf32, #tpu.memory_space<vmem>>, vector<1x1x1x16xf32>,
    return
  }
  func.func @transform_0(%arg0: i32, %arg1: i32) -> (i32, i32, i32, i32) {
    %c0_i32 = arith.constant 0 : i32
    %c0_i32_0 = arith.constant 0 : i32
    %c0_i32_1 = arith.constant 0 : i32
    return %arg0, %c0_i32, %arg1, %c0_i32_0 : i32, i32, i32, i32
  }
  func.func @transform_1(%arg0: i32, %arg1: i32) -> (i32, i32, i32, i32) {
    %c1_i32 = arith.constant 1 : i32
    %0 = arith.muli %arg1, %c1_i32 : i32
    %c1_i32_0 = arith.constant 1 : i32
    %1 = arith.subi %0, %c1_i32_0 : i32
    %c0_i32 = arith.constant 0 : i32
    %2 = arith.maxsi %1, %c0_i32 : i32
    %c0_i32_1 = arith.constant 0 : i32
    %c0_i32_2 = arith.constant 0 : i32
    %c0_i32_3 = arith.constant 0 : i32
    return %arg0, %c0_i32_1, %2, %c0_i32_2 : i32, i32, i32, i32
  }
  func.func @transform_2(%arg0: i32, %arg1: i32) -> (i32, i32, i32, i32) {
    %c1_i32 = arith.constant 1 : i32
    %0 = arith.addi %arg1, %c1_i32 : i32
    %c1_i32_0 = arith.constant 1 : i32
    %1 = arith.muli %0, %c1_i32_0 : i32
    %c1_i32_1 = arith.constant 1 : i32
    %2 = arith.minsi %1, %c1_i32_1 : i32
    %c0_i32 = arith.constant 0 : i32
    %c0_i32_2 = arith.constant 0 : i32
    %c0_i32_3 = arith.constant 0 : i32
    return %arg0, %c0_i32, %2, %c0_i32_2 : i32, i32, i32, i32
  }
  func.func @transform_3(%arg0: i32, %arg1: i32) -> i32 {
    %c0_i32 = arith.constant 0 : i32
    %c0_i32_0 = arith.constant 0 : i32
    return %c0_i32 : i32
  }
  func.func @transform_4(%arg0: i32, %arg1: i32) -> (i32, i32, i32, i32) {
    %c0_i32 = arith.constant 0 : i32
    %c0_i32_0 = arith.constant 0 : i32
    %c0_i32_1 = arith.constant 0 : i32
    return %arg0, %c0_i32, %arg1, %c0_i32_0 : i32, i32, i32, i32
  }
  func.func @transform_5(%arg0: i32, %arg1: i32) -> (i32, i32, i32, i32) {
    %c0_i32 = arith.constant 0 : i32
    %c0_i32_0 = arith.constant 0 : i32
    %c0_i32_1 = arith.constant 0 : i32
    return %arg0, %arg1, %c0_i32, %c0_i32_0 : i32, i32, i32, i32
  }
}

</mosaic_0001>

<llo_original>
// kernel: tpu_custom_call.1
$region0: #{tpu_custom_call.1}
  #allocation0 [shape = 'u32[]', space=smem, size = 0x4, offset = 0x4, fixed_abs, tag = 'smem constant byte address 0x4 - core index']
  #allocation1 [shape = 'u32[144,128]{1,0:T(1,128)}', space=vmem, size = 0x12000, scoped, tag = 'internal scratch']
  #allocation2 [shape = 'f32[4,10,16]{2,1,0:T(8,128)}', space=vmem, size = 0x8000, scoped, tag = 'scratch operand']
  #allocation3 [shape = 'f32[2,8,17]{2,1,0:T(8,128)}', space=vmem, size = 0x2000, scoped, tag = 'scratch operand']
  %s0 = inlined_call_operand.hbm [shape: f32[2,4,16,16], index: 0, kind: input, shape index: {}]
  %s1 = inlined_call_operand.hbm [shape: f32[2,4,16,16], index: 1, kind: input, shape index: {}]
  %s2 = inlined_call_operand.hbm [shape: f32[2,4,16,16], index: 2, kind: input, shape index: {}]
  %s3 = inlined_call_operand.vmem [shape: f32[72], index: 3, kind: input, shape index: {}]
  %s4 = inlined_call_operand.hbm [shape: f32[2,2,16,16], index: 4, kind: output, shape index: {0}]
  %s5 = inlined_call_operand.hbm [shape: f32[2,2,4,16], index: 5, kind: output, shape index: {1}]
  %6 = xla_tuple %s4, %s5
  %s7 = sld [smem:[#allocation0]]
  $region73: #{tpu_custom_call.1} parent=0
    _
  %s9 = ssub.s32 1, %s7
  %s10 = scalar_select 0, %s9, %s7
  $region1: #{tpu_custom_call.1} parent=0
    #allocation4 [shape = 'u8[32768]{0}', space=vmem, size = 0x8000, scoped, tag = 'input window, operand 0']
    #allocation5 [shape = 's32[2]{0}', space=sflag, size = 0x8, scoped, tag = 'scoped memory for tpu_custom_call.1']
    #allocation6 [shape = 's32[2]{0}', space=sflag, size = 0x8, scoped, tag = 'scoped memory for tpu_custom_call.1']
    #allocation7 [shape = 's32[2]{0}', space=sflag, size = 0x8, scoped, tag = 'scoped memory for tpu_custom_call.1']
    #allocation8 [shape = 'u8[32768]{0}', space=vmem, size = 0x8000, scoped, tag = 'input window, operand 1']
    #allocation9 [shape = 's32[2]{0}', space=sflag, size = 0x8, scoped, tag = 'scoped memory for tpu_custom_call.1']
    #allocation10 [shape = 'u8[32768]{0}', space=vmem, size = 0x8000, scoped, tag = 'input window, operand 2']
    #allocation11 [shape = 'u8[512]{0}', space=smem, size = 0x200, scoped, tag = 'input window, operand 3, single buffered']
    #allocation12 [shape = 'u8[16384]{0}', space=vmem, size = 0x4000, scoped, tag = 'output window, operand 0']
    #allocation13 [shape = 'u8[4096]{0}', space=vmem, size = 0x1000, scoped, tag = 'output window, operand 1']
    #allocation14 [shape = 's32[2]{0}', space=sflag, size = 0x8, scoped, tag = 'scoped memory for tpu_custom_call.1']
    %11 = vsyncpa [#allocation5], 0
    %s12 = scalar_lea.sflag [#allocation5], 1
    %13 = vsyncpa %s12, 0
    %14 = vsyncpa [#allocation9], 0
    %s15 = scalar_lea.sflag [#allocation9], 1
    %16 = vsyncpa %s15, 0
    %17 = vsyncpa [#allocation7], 0
    %18 = vsyncpa [#allocation6], 0
    %s19 = scalar_lea.sflag [#allocation6], 1
    %20 = vsyncpa %s19, 0
    %21 = vsyncpa [#allocation14], 0
    %s22 = scalar_lea.sflag [#allocation14], 1
    %23 = vsyncpa %s22, 0
    loop: start=0, step=1, limit=6
    $region2: #{tpu_custom_call.1} parent=1 // loop_pre_header
      _
    $region3: #{tpu_custom_call.1} parent=1 // loop_header
      %s25 = sphi 0, %s29
      %p26 = scmp.ge.s32.totalorder %s25, 6
      %s32 = sphi 0, %s44
      %s33 = sphi 0, %s40
      %s34 = sphi 0, %s32
      %s35 = sphi 0, %s33
      %s36 = sphi 0, %s34
      %s37 = sphi 0, %s35
      %s49 = sphi 0, %s51
      %s52 = sphi 0, %s49
      %s53 = sphi 0, %s52
      %s69 = sphi 0, %s53
      %s83 = sphi 0, %s85
      %s86 = sphi 0, %s83
      %s87 = sphi 0, %s86
      %s103 = sphi 0, %s87
      %s117 = sphi 0, %s119
      %s120 = sphi 0, %s117
      %s121 = sphi 0, %s120
      %s137 = sphi 0, %s121
      %s141 = sphi 0, %s141
      %s143 = sphi 0, %s141
      %s144 = sphi 0, %s143
      %s158 = sphi 0, %s144
      %s166 = sphi 0, %s168
      %s169 = sphi 0, %s166
      %s170 = sphi 0, %s169
      %s186 = sphi 0, %s170
      %s194 = sphi 0, %s196
      %s197 = sphi 0, %s194
      %s198 = sphi 0, %s197
      %s214 = sphi 0, %s198
    $region4: #{tpu_custom_call.1} parent=1 // loop_header_branch
      %28 = sbr.rel (%p26) target = $region8
    $region5: #{tpu_custom_call.1} parent=1 // loop_body
      %s30 = ssub.s32 %s25, 1
      %s31 = ssub.s32 %s25, 2
      %s38 = sadd.s32 1, %s33
      %p39 = scmp.ge.s32.totalorder %s38, 2
      %s40 = scalar_select %p39, 0, %s38
      %s41 = sadd.s32 1, %s32
      %s42 = scalar_select %p39, %s41, %s32
      %p43 = scmp.ge.s32.totalorder %s42, 2
      %s44 = scalar_select %p43, 0, %s42
      %s45 = ssub.s32 %s32, %s44
      %s46 = ssub.s32 %s33, %s40
      %s47 = sor.u32 %s45, %s46
      %p48 = scmp.eq.s32.totalorder %s47, 0
      %s50 = sadd.s32 %s49, 1
      %s51 = scalar_select %p48, %s49, %s50
      %p54 = pneg %p48
      %p55 = scmp.eq.s32.totalorder %s25, 3
      %p56 = por %p54, %p55
      %p57 = scmp.ne.s32.totalorder %s49, %s52
      %p58 = scmp.eq.s32.totalorder %s25, 0
      %p59 = por %p57, %p58
      %p60 = scmp.ne.s32.totalorder %s49, %s52
      %p61 = scmp.eq.s32.totalorder %s30, 3
      %p62 = por %p60, %p61
      %p63 = scmp.ne.s32.totalorder %s52, %s53
      %p64 = scmp.eq.s32.totalorder %s30, 0
      %p65 = por %p63, %p64
      %p66 = scmp.ne.s32.totalorder %s52, %s53
      %p67 = scmp.eq.s32.totalorder %s31, 3
      %p68 = por %p66, %p67
      %p70 = scmp.ne.s32.totalorder %s53, %s69
      %p71 = scmp.eq.s32.totalorder %s31, 0
      %p72 = por %p70, %p71
      %s73 = ssub.s32 %s33, 1
      %p74 = scmp.gt.s32.totalorder %s73, 0
      %s75 = scalar_select %p74, %s73, 0
      %s76 = ssub.s32 %s40, 1
      %p77 = scmp.gt.s32.totalorder %s76, 0
      %s78 = scalar_select %p77, %s76, 0
      %s79 = ssub.s32 %s32, %s44
      %s80 = ssub.s32 %s75, %s78
      %s81 = sor.u32 %s79, %s80
      %p82 = scmp.eq.s32.totalorder %s81, 0
      %s84 = sadd.s32 %s83, 1
      %s85 = scalar_select %p82, %s83, %s84
      %p88 = pneg %p82
      %p89 = scmp.eq.s32.totalorder %s25, 3
      %p90 = por %p88, %p89
      %p91 = scmp.ne.s32.totalorder %s83, %s86
      %p92 = scmp.eq.s32.totalorder %s25, 0
      %p93 = por %p91, %p92
      %p94 = scmp.ne.s32.totalorder %s83, %s86
      %p95 = scmp.eq.s32.totalorder %s30, 3
      %p96 = por %p94, %p95
      %p97 = scmp.ne.s32.totalorder %s86, %s87
      %p98 = scmp.eq.s32.totalorder %s30, 0
      %p99 = por %p97, %p98
      %p100 = scmp.ne.s32.totalorder %s86, %s87
      %p101 = scmp.eq.s32.totalorder %s31, 3
      %p102 = por %p100, %p101
      %p104 = scmp.ne.s32.totalorder %s87, %s103
      %p105 = scmp.eq.s32.totalorder %s31, 0
      %p106 = por %p104, %p105
      %s107 = sadd.s32 %s33, 1
      %p108 = scmp.lt.s32.totalorder %s107, 1
      %s109 = scalar_select %p108, %s107, 1
      %s110 = sadd.s32 %s40, 1
      %p111 = scmp.lt.s32.totalorder %s110, 1
      %s112 = scalar_select %p111, %s110, 1
      %s113 = ssub.s32 %s32, %s44
      %s114 = ssub.s32 %s109, %s112
      %s115 = sor.u32 %s113, %s114
      %p116 = scmp.eq.s32.totalorder %s115, 0
      %s118 = sadd.s32 %s117, 1
      %s119 = scalar_select %p116, %s117, %s118
      %p122 = pneg %p116
      %p123 = scmp.eq.s32.totalorder %s25, 3
      %p124 = por %p122, %p123
      %p125 = scmp.ne.s32.totalorder %s117, %s120
      %p126 = scmp.eq.s32.totalorder %s25, 0
      %p127 = por %p125, %p126
      %p128 = scmp.ne.s32.totalorder %s117, %s120
      %p129 = scmp.eq.s32.totalorder %s30, 3
      %p130 = por %p128, %p129
      %p131 = scmp.ne.s32.totalorder %s120, %s121
      %p132 = scmp.eq.s32.totalorder %s30, 0
      %p133 = por %p131, %p132
      %p134 = scmp.ne.s32.totalorder %s120, %s121
      %p135 = scmp.eq.s32.totalorder %s31, 3
      %p136 = por %p134, %p135
      %p138 = scmp.ne.s32.totalorder %s121, %s137
      %p139 = scmp.eq.s32.totalorder %s31, 0
      %p140 = por %p138, %p139
      %s142 = sadd.s32 %s141, 1
      %p145 = scmp.eq.s32.totalorder %s25, 3
      %p146 = scmp.ne.s32.totalorder %s141, %s143
      %p147 = scmp.eq.s32.totalorder %s25, 0
      %p148 = por %p146, %p147
      %p149 = scmp.ne.s32.totalorder %s141, %s143
      %p150 = scmp.eq.s32.totalorder %s30, 3
      %p151 = por %p149, %p150
      %p152 = scmp.ne.s32.totalorder %s143, %s144
      %p153 = scmp.eq.s32.totalorder %s30, 0
      %p154 = por %p152, %p153
      %p155 = scmp.ne.s32.totalorder %s143, %s144
      %p156 = scmp.eq.s32.totalorder %s31, 3
      %p157 = por %p155, %p156
      %p159 = scmp.ne.s32.totalorder %s144, %s158
      %p160 = scmp.eq.s32.totalorder %s31, 0
      %p161 = por %p159, %p160
      %s162 = ssub.s32 %s32, %s44
      %s163 = ssub.s32 %s33, %s40
      %s164 = sor.u32 %s162, %s163
      %p165 = scmp.eq.s32.totalorder %s164, 0
      %s167 = sadd.s32 %s166, 1
      %s168 = scalar_select %p165, %s166, %s167
      %p171 = pneg %p165
      %p172 = scmp.eq.s32.totalorder %s25, 3
      %p173 = por %p171, %p172
      %p174 = scmp.ne.s32.totalorder %s166, %s169
      %p175 = scmp.eq.s32.totalorder %s25, 0
      %p176 = por %p174, %p175
      %p177 = scmp.ne.s32.totalorder %s166, %s169
      %p178 = scmp.eq.s32.totalorder %s30, 3
      %p179 = por %p177, %p178
      %p180 = scmp.ne.s32.totalorder %s169, %s170
      %p181 = scmp.eq.s32.totalorder %s30, 0
      %p182 = por %p180, %p181
      %p183 = scmp.ne.s32.totalorder %s169, %s170
      %p184 = scmp.eq.s32.totalorder %s31, 3
      %p185 = por %p183, %p184
      %p187 = scmp.ne.s32.totalorder %s170, %s186
      %p188 = scmp.eq.s32.totalorder %s31, 0
      %p189 = por %p187, %p188
      %s190 = ssub.s32 %s32, %s44
      %s191 = ssub.s32 %s33, %s40
      %s192 = sor.u32 %s190, %s191
      %p193 = scmp.eq.s32.totalorder %s192, 0
      %s195 = sadd.s32 %s194, 1
      %s196 = scalar_select %p193, %s194, %s195
      %p199 = pneg %p193
      %p200 = scmp.eq.s32.totalorder %s25, 3
      %p201 = por %p199, %p200
      %p202 = scmp.ne.s32.totalorder %s194, %s197
      %p203 = scmp.eq.s32.totalorder %s25, 0
      %p204 = por %p202, %p203
      %p205 = scmp.ne.s32.totalorder %s194, %s197
      %p206 = scmp.eq.s32.totalorder %s30, 3
      %p207 = por %p205, %p206
      %p208 = scmp.ne.s32.totalorder %s197, %s198
      %p209 = scmp.eq.s32.totalorder %s30, 0
      %p210 = por %p208, %p209
      %p211 = scmp.ne.s32.totalorder %s197, %s198
      %p212 = scmp.eq.s32.totalorder %s31, 3
      %p213 = por %p211, %p212
      %p215 = scmp.ne.s32.totalorder %s198, %s214
      %p216 = scmp.eq.s32.totalorder %s31, 0
      %p217 = por %p215, %p216
      %p218 = scmp.le.s32.totalorder 1, %s25
      %p219 = scmp.lt.s32.totalorder %s25, 5
      %p220 = pnand %p218, %p219
      %p221 = pneg %p220
      // Predicated region
      $region9: #{tpu_custom_call.1} parent=5 // pred_check
        _
      $region10: #{tpu_custom_call.1} parent=5 // pred_check_branch
        %223 = sbr.rel (%p220) target = $region12
      $region11: #{tpu_custom_call.1} parent=5 // pred_region
        %s224 = ssub.s32 %s25, 1
        // Predicated region
        $region13: #{tpu_custom_call.1} parent=11 // pred_check
          %p225 = pneg %p154
        $region14: #{tpu_custom_call.1} parent=11 // pred_check_branch
          %227 = sbr.rel (%p225) target = $region16
        $region15: #{tpu_custom_call.1} parent=11 // pred_region
          %s229 = ssub.s32 16, 16
          %230 = vsyncadd [#allocation7], %s229
          %s232 = sshll.u32 %s3, 4
          %s233 = int_to_ptr.vmem [resolvable:$true] %s232
          %235 = dma.vmem_to_smem %s233, 16, [#allocation11], [#allocation7]
        $region16: #{tpu_custom_call.1} parent=11 // pred_fallthru
          _
      $region12: #{tpu_custom_call.1} parent=5 // pred_fallthru
        _
      %p236 = scmp.lt.s32.totalorder %s25, 4
      // Predicated region
      $region17: #{tpu_custom_call.1} parent=5 // pred_check
        %p237 = pneg %p236
      $region18: #{tpu_custom_call.1} parent=5 // pred_check_branch
        %239 = sbr.rel (%p237) target = $region20
      $region19: #{tpu_custom_call.1} parent=5 // pred_region
        // Predicated region
        $region21: #{tpu_custom_call.1} parent=19 // pred_check
          %p240 = pneg %p59
        $region22: #{tpu_custom_call.1} parent=19 // pred_check_branch
          %242 = sbr.rel (%p240) target = $region24
        $region23: #{tpu_custom_call.1} parent=19 // pred_region
          %s243 = sand.u32 %s49, 1
          %s244 = scalar_lea.sflag [#allocation5], %s243
          %s245 = sand.u32 %s49, 1
          %s246 = smul.addr %s245, 32
          %s247 = scalar_lea.vmem [#allocation4], %s246
          %s249 = ssub.s32 512, 512
          %250 = vsyncadd %s244, %s249
          %s251 = smul.addr %s32, 8
          %s252 = sadd.s32 %s33, %s251
          %s253 = smul.addr %s252, 128
          %s254 = scalar_lea.hbm %s0, %s253
          %s255 = sshll.u32 %s247, 4
          %s256 = int_to_ptr.vmem [resolvable:$true] %s255
          %261 = dma.hbm_to_vmem [thread:$0]  %s254, 512, %s256, %s244, 256, 128, 8
        $region24: #{tpu_custom_call.1} parent=19 // pred_fallthru
          _
        // Predicated region
        $region25: #{tpu_custom_call.1} parent=19 // pred_check
          %p262 = pneg %p93
        $region26: #{tpu_custom_call.1} parent=19 // pred_check_branch
          %264 = sbr.rel (%p262) target = $region28
        $region27: #{tpu_custom_call.1} parent=19 // pred_region
          %s265 = sand.u32 %s25, 1
          %s266 = scalar_lea.sflag [#allocation9], %s265
          %s267 = sand.u32 %s83, 1
          %s268 = smul.addr %s267, 32
          %s269 = scalar_lea.vmem [#allocation8], %s268
          %s270 = ssub.s32 %s33, 1
          %p271 = scmp.gt.s32.totalorder %s270, 0
          %s272 = scalar_select %p271, %s270, 0
          %s274 = ssub.s32 512, 512
          %275 = vsyncadd %s266, %s274
          %s276 = smul.addr %s32, 8
          %s277 = sadd.s32 %s272, %s276
          %s278 = smul.addr %s277, 128
          %s279 = scalar_lea.hbm %s1, %s278
          %s280 = sshll.u32 %s269, 4
          %s281 = int_to_ptr.vmem [resolvable:$true] %s280
          %286 = dma.hbm_to_vmem [thread:$0]  %s279, 512, %s281, %s266, 256, 128, 8
        $region28: #{tpu_custom_call.1} parent=19 // pred_fallthru
          _
        // Predicated region
        $region29: #{tpu_custom_call.1} parent=19 // pred_check
          %p287 = pneg %p127
        $region30: #{tpu_custom_call.1} parent=19 // pred_check_branch
          %289 = sbr.rel (%p287) target = $region32
        $region31: #{tpu_custom_call.1} parent=19 // pred_region
          %s290 = sand.u32 %s25, 1
          %s291 = scalar_lea.sflag [#allocation9], %s290
          %s292 = sand.u32 %s117, 1
          %s293 = smul.addr %s292, 32
          %s294 = scalar_lea.vmem [#allocation10], %s293
          %s295 = sadd.s32 %s33, 1
          %p296 = scmp.lt.s32.totalorder %s295, 1
          %s297 = scalar_select %p296, %s295, 1
          %s299 = ssub.s32 512, 512
          %300 = vsyncadd %s291, %s299
          %s301 = smul.addr %s32, 8
          %s302 = sadd.s32 %s297, %s301
          %s303 = smul.addr %s302, 128
          %s304 = scalar_lea.hbm %s2, %s303
          %s305 = sshll.u32 %s294, 4
          %s306 = int_to_ptr.vmem [resolvable:$true] %s305
          %311 = dma.hbm_to_vmem [thread:$0]  %s304, 512, %s306, %s291, 256, 128, 8
        $region32: #{tpu_custom_call.1} parent=19 // pred_fallthru
          _
      $region20: #{tpu_custom_call.1} parent=5 // pred_fallthru
        _
      %p312 = scmp.le.s32.totalorder 1, %s25
      %p313 = scmp.lt.s32.totalorder %s25, 5
      %p314 = pnand %p312, %p313
      %p315 = pneg %p314
      // Predicated region
      $region33: #{tpu_custom_call.1} parent=5 // pred_check
        _
      $region34: #{tpu_custom_call.1} parent=5 // pred_check_branch
        %317 = sbr.rel (%p314) target = $region36
      $region35: #{tpu_custom_call.1} parent=5 // pred_region
        %s318 = ssub.s32 %s25, 1
        %s319 = sand.u32 %s52, 1
        %s320 = scalar_lea.sflag [#allocation5], %s319
        %s321 = sand.u32 %s52, 1
        %s322 = smul.addr %s321, 32
        %s323 = scalar_lea.vmem [#allocation4], %s322
        // Predicated region
        $region37: #{tpu_custom_call.1} parent=35 // pred_check
          %p324 = pneg %p65
        $region38: #{tpu_custom_call.1} parent=35 // pred_check_branch
          %326 = sbr.rel (%p324) target = $region40
        $region39: #{tpu_custom_call.1} parent=35 // pred_region
          %327 = dma.done %s320, 512
        $region40: #{tpu_custom_call.1} parent=35 // pred_fallthru
          _
        %s328 = sand.u32 %s30, 1
        %s329 = scalar_lea.sflag [#allocation9], %s328
        %s330 = sand.u32 %s86, 1
        %s331 = smul.addr %s330, 32
        %s332 = scalar_lea.vmem [#allocation8], %s331
        // Predicated region
        $region41: #{tpu_custom_call.1} parent=35 // pred_check
          %p333 = pneg %p99
        $region42: #{tpu_custom_call.1} parent=35 // pred_check_branch
          %335 = sbr.rel (%p333) target = $region44
        $region43: #{tpu_custom_call.1} parent=35 // pred_region
          %336 = dma.done %s329, 512
        $region44: #{tpu_custom_call.1} parent=35 // pred_fallthru
          _
        %s337 = sand.u32 %s30, 1
        %s338 = scalar_lea.sflag [#allocation9], %s337
        %s339 = sand.u32 %s120, 1
        %s340 = smul.addr %s339, 32
        %s341 = scalar_lea.vmem [#allocation10], %s340
        // Predicated region
        $region45: #{tpu_custom_call.1} parent=35 // pred_check
          %p342 = pneg %p133
        $region46: #{tpu_custom_call.1} parent=35 // pred_check_branch
          %344 = sbr.rel (%p342) target = $region48
        $region47: #{tpu_custom_call.1} parent=35 // pred_region
          %345 = dma.done %s338, 512
        $region48: #{tpu_custom_call.1} parent=35 // pred_fallthru
          _
        // Predicated region
        $region49: #{tpu_custom_call.1} parent=35 // pred_check
          %p346 = pneg %p154
        $region50: #{tpu_custom_call.1} parent=35 // pred_check_branch
          %348 = sbr.rel (%p346) target = $region52
        $region51: #{tpu_custom_call.1} parent=35 // pred_region
          %349 = dma.done [#allocation7], 16
        $region52: #{tpu_custom_call.1} parent=35 // pred_fallthru
          _
        %350 = sfence
        %s351 = sand.u32 %s52, 1
        %s352 = scalar_lea.sflag [#allocation5], %s351
        %s353 = sand.u32 %s52, 1
        %s354 = smul.addr %s353, 32
        %s355 = scalar_lea.vmem [#allocation4], %s354
        %p356 = pneg %p65
        %p357 = pneg %p62
        %s358 = sand.u32 %s30, 1
        %s359 = scalar_lea.sflag [#allocation9], %s358
        %s360 = sand.u32 %s86, 1
        %s361 = smul.addr %s360, 32
        %s362 = scalar_lea.vmem [#allocation8], %s361
        %p363 = pneg %p99
        %p364 = pneg %p96
        %s365 = sand.u32 %s30, 1
        %s366 = scalar_lea.sflag [#allocation9], %s365
        %s367 = sand.u32 %s120, 1
        %s368 = smul.addr %s367, 32
        %s369 = scalar_lea.vmem [#allocation10], %s368
        %p370 = pneg %p133
        %p371 = pneg %p130
        %p372 = pneg %p154
        %p373 = pneg %p151
        %p374 = pneg %p182
        %p375 = pneg %p179
        %s376 = sand.u32 %s169, 1
        %s377 = scalar_lea.sflag [#allocation6], %s376
        %s378 = sand.u32 %s169, 1
        %s379 = smul.addr %s378, 16
        %s380 = scalar_lea.vmem [#allocation12], %s379
        %p381 = pneg %p210
        %p382 = pneg %p207
        %s383 = sand.u32 %s197, 1
        %s384 = scalar_lea.sflag [#allocation14], %s383
        %s385 = sand.u32 %s197, 1
        %s386 = smul.addr %s385, 4
        %s387 = scalar_lea.vmem [#allocation13], %s386
        %s388 = ssub.s32 %s35, 1
        %p389 = scmp.gt.s32.totalorder %s388, 0
        %s390 = scalar_select %p389, %s388, 0
        %s391 = sadd.s32 %s35, 1
        %p392 = scmp.lt.s32.totalorder %s391, 1
        %s393 = scalar_select %p392, %s391, 1
        %p394 = scmp.gt.s32.totalorder %s35, 0
        %s395 = scalar_select %p394, 1, 0
        %s396 = scvt.s32.f32 %s395
        %p397 = scmp.lt.s32.totalorder %s35, 1
        %s398 = scalar_select %p397, 1, 0
        %s399 = scvt.s32.f32 %s398
        %v400 = vld [vmem:[%s323] sm:$0xff]
        %vm401 = vcmask 130048
        %402 = vst.msk [vmem:[#allocation2 + $0x1] sm:$0xff] %vm401, %v400
        %v403 = vld [vmem:[%s332 + $0x7] sm:$0x1]
        %v404 = vstv %s396
        %v405 = vmul.f32 %v403, %v404
        %vm406 = vcmask 122880
        %407 = vst.msk [vmem:[#allocation2] sm:$0x1] %vm406, %v405
        %v408 = vld [vmem:[%s341] sm:$0x1]
        %v409 = vstv %s399
        %v410 = vmul.f32 %v408, %v409
        %411 = vst.msk [vmem:[#allocation2 + $0x9] sm:$0x1] %vm406, %v410
        %s412 = scalar_lea.vmem %s323, 8 [#allocation4]
        %v413 = vld [vmem:[%s412] sm:$0xff]
        %s414 = scalar_lea.vmem [#allocation2], 16
        %415 = vst.msk [vmem:[%s414 + $0x1] sm:$0xff] %vm401, %v413
        %s416 = scalar_lea.vmem %s332, 8 [#allocation8]
        %v417 = vld [vmem:[%s416 + $0x7] sm:$0x1]
        %v418 = vmul.f32 %v417, %v404
        %419 = vst.msk [vmem:[%s414] sm:$0x1] %vm406, %v418
        %s420 = scalar_lea.vmem %s341, 8 [#allocation10]
        %v421 = vld [vmem:[%s420] sm:$0x1]
        %v422 = vmul.f32 %v421, %v409
        %423 = vst.msk [vmem:[%s414 + $0x9] sm:$0x1] %vm406, %v422
        %s424 = scalar_lea.vmem %s323, 16 [#allocation4]
        %v425 = vld [vmem:[%s424] sm:$0xff]
        %s426 = scalar_lea.vmem [#allocation2], 32
        %427 = vst.msk [vmem:[%s426 + $0x1] sm:$0xff] %vm401, %v425
        %s428 = scalar_lea.vmem %s332, 16 [#allocation8]
        %v429 = vld [vmem:[%s428 + $0x7] sm:$0x1]
        %v430 = vmul.f32 %v429, %v404
        %431 = vst.msk [vmem:[%s426] sm:$0x1] %vm406, %v430
        %s432 = scalar_lea.vmem %s341, 16 [#allocation10]
        %v433 = vld [vmem:[%s432] sm:$0x1]
        %v434 = vmul.f32 %v433, %v409
        %435 = vst.msk [vmem:[%s426 + $0x9] sm:$0x1] %vm406, %v434
        %s436 = scalar_lea.vmem %s323, 24 [#allocation4]
        %v437 = vld [vmem:[%s436] sm:$0xff]
        %s438 = scalar_lea.vmem [#allocation2], 48
        %439 = vst.msk [vmem:[%s438 + $0x1] sm:$0xff] %vm401, %v437
        %s440 = scalar_lea.vmem %s332, 24 [#allocation8]
        %v441 = vld [vmem:[%s440 + $0x7] sm:$0x1]
        %v442 = vmul.f32 %v441, %v404
        %443 = vst.msk [vmem:[%s438] sm:$0x1] %vm406, %v442
        %s444 = scalar_lea.vmem %s341, 24 [#allocation10]
        %v445 = vld [vmem:[%s444] sm:$0x1]
        %v446 = vmul.f32 %v445, %v409
        %447 = vst.msk [vmem:[%s438 + $0x9] sm:$0x1] %vm406, %v446
        %v448 = vld [vmem:[#allocation2] sm:$0xff]
        %s449 = sld [smem:[#allocation11]]
        %v450 = vstv %s449
        %v451 = vmul.f32 %v450, %v448
        %s452 = sld [smem:[#allocation11 + $0x1]]
        %v453 = vstv %s452
        %v454 = vmul.f32 %v453, %v448
        %s455 = sld [smem:[#allocation11 + $0x2]]
        %v456 = vstv %s455
        %v457 = vmul.f32 %v456, %v448
        %s458 = sld [smem:[#allocation11 + $0x24]]
        %v459 = vstv %s458
        %v460 = vmul.f32 %v459, %v448
        %s461 = sld [smem:[#allocation11 + $0x25]]
        %v462 = vstv %s461
        %v463 = vmul.f32 %v462, %v448
        %s464 = sld [smem:[#allocation11 + $0x26]]
        %v465 = vstv %s464
        %v466 = vmul.f32 %v465, %v448
        %v467 = vld [vmem:[#allocation2 + $0x1] sm:$0xff]
        %s468 = sld [smem:[#allocation11 + $0x3]]
        %v469 = vstv %s468
        %v470 = vmul.f32 %v469, %v467
        %v471 = vadd.f32 %v451, %v470
        %s472 = sld [smem:[#allocation11 + $0x4]]
        %v473 = vstv %s472
        %v474 = vmul.f32 %v473, %v467
        %v475 = vadd.f32 %v454, %v474
        %s476 = sld [smem:[#allocation11 + $0x5]]
        %v477 = vstv %s476
        %v478 = vmul.f32 %v477, %v467
        %v479 = vadd.f32 %v457, %v478
        %s480 = sld [smem:[#allocation11 + $0x27]]
        %v481 = vstv %s480
        %v482 = vmul.f32 %v481, %v467
        %v483 = vadd.f32 %v460, %v482
        %s484 = sld [smem:[#allocation11 + $0x28]]
        %v485 = vstv %s484
        %v486 = vmul.f32 %v485, %v467
        %v487 = vadd.f32 %v463, %v486
        %s488 = sld [smem:[#allocation11 + $0x29]]
        %v489 = vstv %s488
        %v490 = vmul.f32 %v489, %v467
        %v491 = vadd.f32 %v466, %v490
        %v492 = vld [vmem:[#allocation2 + $0x2] sm:$0xff]
        %s493 = sld [smem:[#allocation11 + $0x6]]
        %v494 = vstv %s493
        %v495 = vmul.f32 %v494, %v492
        %v496 = vadd.f32 %v471, %v495
        %s497 = sld [smem:[#allocation11 + $0x7]]
        %v498 = vstv %s497
        %v499 = vmul.f32 %v498, %v492
        %v500 = vadd.f32 %v475, %v499
        %s501 = sld [smem:[#allocation11 + $0x8]]
        %v502 = vstv %s501
        %v503 = vmul.f32 %v502, %v492
        %v504 = vadd.f32 %v479, %v503
        %s505 = sld [smem:[#allocation11 + $0x2a]]
        %v506 = vstv %s505
        %v507 = vmul.f32 %v506, %v492
        %v508 = vadd.f32 %v483, %v507
        %s509 = sld [smem:[#allocation11 + $0x2b]]
        %v510 = vstv %s509
        %v511 = vmul.f32 %v510, %v492
        %v512 = vadd.f32 %v487, %v511
        %s513 = sld [smem:[#allocation11 + $0x2c]]
        %v514 = vstv %s513
        %v515 = vmul.f32 %v514, %v492
        %v516 = vadd.f32 %v491, %v515
        %v517 = vld [vmem:[%s414] sm:$0xff]
        %s518 = sld [smem:[#allocation11 + $0x9]]
        %v519 = vstv %s518
        %v520 = vmul.f32 %v519, %v517
        %v521 = vadd.f32 %v496, %v520
        %s522 = sld [smem:[#allocation11 + $0xa]]
        %v523 = vstv %s522
        %v524 = vmul.f32 %v523, %v517
        %v525 = vadd.f32 %v500, %v524
        %s526 = sld [smem:[#allocation11 + $0xb]]
        %v527 = vstv %s526
        %v528 = vmul.f32 %v527, %v517
        %v529 = vadd.f32 %v504, %v528
        %s530 = sld [smem:[#allocation11 + $0x2d]]
        %v531 = vstv %s530
        %v532 = vmul.f32 %v531, %v517
        %v533 = vadd.f32 %v508, %v532
        %s534 = sld [smem:[#allocation11 + $0x2e]]
        %v535 = vstv %s534
        %v536 = vmul.f32 %v535, %v517
        %v537 = vadd.f32 %v512, %v536
        %s538 = sld [smem:[#allocation11 + $0x2f]]
        %v539 = vstv %s538
        %v540 = vmul.f32 %v539, %v517
        %v541 = vadd.f32 %v516, %v540
        %v542 = vld [vmem:[%s414 + $0x1] sm:$0xff]
        %s543 = sld [smem:[#allocation11 + $0xc]]
        %v544 = vstv %s543
        %v545 = vmul.f32 %v544, %v542
        %v546 = vadd.f32 %v521, %v545
        %s547 = sld [smem:[#allocation11 + $0xd]]
        %v548 = vstv %s547
        %v549 = vmul.f32 %v548, %v542
        %v550 = vadd.f32 %v525, %v549
        %s551 = sld [smem:[#allocation11 + $0xe]]
        %v552 = vstv %s551
        %v553 = vmul.f32 %v552, %v542
        %v554 = vadd.f32 %v529, %v553
        %s555 = sld [smem:[#allocation11 + $0x30]]
        %v556 = vstv %s555
        %v557 = vmul.f32 %v556, %v542
        %v558 = vadd.f32 %v533, %v557
        %s559 = sld [smem:[#allocation11 + $0x31]]
        %v560 = vstv %s559
        %v561 = vmul.f32 %v560, %v542
        %v562 = vadd.f32 %v537, %v561
        %s563 = sld [smem:[#allocation11 + $0x32]]
        %v564 = vstv %s563
        %v565 = vmul.f32 %v564, %v542
        %v566 = vadd.f32 %v541, %v565
        %v567 = vld [vmem:[%s414 + $0x2] sm:$0xff]
        %s568 = sld [smem:[#allocation11 + $0xf]]
        %v569 = vstv %s568
        %v570 = vmul.f32 %v569, %v567
        %v571 = vadd.f32 %v546, %v570
        %s572 = sld [smem:[#allocation11 + $0x10]]
        %v573 = vstv %s572
        %v574 = vmul.f32 %v573, %v567
        %v575 = vadd.f32 %v550, %v574
        %s576 = sld [smem:[#allocation11 + $0x11]]
        %v577 = vstv %s576
        %v578 = vmul.f32 %v577, %v567
        %v579 = vadd.f32 %v554, %v578
        %s580 = sld [smem:[#allocation11 + $0x33]]
        %v581 = vstv %s580
        %v582 = vmul.f32 %v581, %v567
        %v583 = vadd.f32 %v558, %v582
        %s584 = sld [smem:[#allocation11 + $0x34]]
        %v585 = vstv %s584
        %v586 = vmul.f32 %v585, %v567
        %v587 = vadd.f32 %v562, %v586
        %s588 = sld [smem:[#allocation11 + $0x35]]
        %v589 = vstv %s588
        %v590 = vmul.f32 %v589, %v567
        %v591 = vadd.f32 %v566, %v590
        %v592 = vld [vmem:[%s426] sm:$0xff]
        %s593 = sld [smem:[#allocation11 + $0x12]]
        %v594 = vstv %s593
        %v595 = vmul.f32 %v594, %v592
        %v596 = vadd.f32 %v571, %v595
        %s597 = sld [smem:[#allocation11 + $0x13]]
        %v598 = vstv %s597
        %v599 = vmul.f32 %v598, %v592
        %v600 = vadd.f32 %v575, %v599
        %s601 = sld [smem:[#allocation11 + $0x14]]
        %v602 = vstv %s601
        %v603 = vmul.f32 %v602, %v592
        %v604 = vadd.f32 %v579, %v603
        %s605 = sld [smem:[#allocation11 + $0x36]]
        %v606 = vstv %s605
        %v607 = vmul.f32 %v606, %v592
        %v608 = vadd.f32 %v583, %v607
        %s609 = sld [smem:[#allocation11 + $0x37]]
        %v610 = vstv %s609
        %v611 = vmul.f32 %v610, %v592
        %v612 = vadd.f32 %v587, %v611
        %s613 = sld [smem:[#allocation11 + $0x38]]
        %v614 = vstv %s613
        %v615 = vmul.f32 %v614, %v592
        %v616 = vadd.f32 %v591, %v615
        %v617 = vld [vmem:[%s426 + $0x1] sm:$0xff]
        %s618 = sld [smem:[#allocation11 + $0x15]]
        %v619 = vstv %s618
        %v620 = vmul.f32 %v619, %v617
        %v621 = vadd.f32 %v596, %v620
        %s622 = sld [smem:[#allocation11 + $0x16]]
        %v623 = vstv %s622
        %v624 = vmul.f32 %v623, %v617
        %v625 = vadd.f32 %v600, %v624
        %s626 = sld [smem:[#allocation11 + $0x17]]
        %v627 = vstv %s626
        %v628 = vmul.f32 %v627, %v617
        %v629 = vadd.f32 %v604, %v628
        %s630 = sld [smem:[#allocation11 + $0x39]]
        %v631 = vstv %s630
        %v632 = vmul.f32 %v631, %v617
        %v633 = vadd.f32 %v608, %v632
        %s634 = sld [smem:[#allocation11 + $0x3a]]
        %v635 = vstv %s634
        %v636 = vmul.f32 %v635, %v617
        %v637 = vadd.f32 %v612, %v636
        %s638 = sld [smem:[#allocation11 + $0x3b]]
        %v639 = vstv %s638
        %v640 = vmul.f32 %v639, %v617
        %v641 = vadd.f32 %v616, %v640
        %v642 = vld [vmem:[%s426 + $0x2] sm:$0xff]
        %s643 = sld [smem:[#allocation11 + $0x18]]
        %v644 = vstv %s643
        %v645 = vmul.f32 %v644, %v642
        %v646 = vadd.f32 %v621, %v645
        %s647 = sld [smem:[#allocation11 + $0x19]]
        %v648 = vstv %s647
        %v649 = vmul.f32 %v648, %v642
        %v650 = vadd.f32 %v625, %v649
        %s651 = sld [smem:[#allocation11 + $0x1a]]
        %v652 = vstv %s651
        %v653 = vmul.f32 %v652, %v642
        %v654 = vadd.f32 %v629, %v653
        %s655 = sld [smem:[#allocation11 + $0x3c]]
        %v656 = vstv %s655
        %v657 = vmul.f32 %v656, %v642
        %v658 = vadd.f32 %v633, %v657
        %s659 = sld [smem:[#allocation11 + $0x3d]]
        %v660 = vstv %s659
        %v661 = vmul.f32 %v660, %v642
        %v662 = vadd.f32 %v637, %v661
        %s663 = sld [smem:[#allocation11 + $0x3e]]
        %v664 = vstv %s663
        %v665 = vmul.f32 %v664, %v642
        %v666 = vadd.f32 %v641, %v665
        %v667 = vld [vmem:[%s438] sm:$0xff]
        %s668 = sld [smem:[#allocation11 + $0x1b]]
        %v669 = vstv %s668
        %v670 = vmul.f32 %v669, %v667
        %v671 = vadd.f32 %v646, %v670
        %s672 = sld [smem:[#allocation11 + $0x1c]]
        %v673 = vstv %s672
        %v674 = vmul.f32 %v673, %v667
        %v675 = vadd.f32 %v650, %v674
        %s676 = sld [smem:[#allocation11 + $0x1d]]
        %v677 = vstv %s676
        %v678 = vmul.f32 %v677, %v667
        %v679 = vadd.f32 %v654, %v678
        %s680 = sld [smem:[#allocation11 + $0x3f]]
        %v681 = vstv %s680
        %v682 = vmul.f32 %v681, %v667
        %v683 = vadd.f32 %v658, %v682
        %s684 = sld [smem:[#allocation11 + $0x40]]
        %v685 = vstv %s684
        %v686 = vmul.f32 %v685, %v667
        %v687 = vadd.f32 %v662, %v686
        %s688 = sld [smem:[#allocation11 + $0x41]]
        %v689 = vstv %s688
        %v690 = vmul.f32 %v689, %v667
        %v691 = vadd.f32 %v666, %v690
        %v692 = vld [vmem:[%s438 + $0x1] sm:$0xff]
        %s693 = sld [smem:[#allocation11 + $0x1e]]
        %v694 = vstv %s693
        %v695 = vmul.f32 %v694, %v692
        %v696 = vadd.f32 %v671, %v695
        %s697 = sld [smem:[#allocation11 + $0x1f]]
        %v698 = vstv %s697
        %v699 = vmul.f32 %v698, %v692
        %v700 = vadd.f32 %v675, %v699
        %s701 = sld [smem:[#allocation11 + $0x20]]
        %v702 = vstv %s701
        %v703 = vmul.f32 %v702, %v692
        %v704 = vadd.f32 %v679, %v703
        %s705 = sld [smem:[#allocation11 + $0x42]]
        %v706 = vstv %s705
        %v707 = vmul.f32 %v706, %v692
        %v708 = vadd.f32 %v683, %v707
        %s709 = sld [smem:[#allocation11 + $0x43]]
        %v710 = vstv %s709
        %v711 = vmul.f32 %v710, %v692
        %v712 = vadd.f32 %v687, %v711
        %s713 = sld [smem:[#allocation11 + $0x44]]
        %v714 = vstv %s713
        %v715 = vmul.f32 %v714, %v692
        %v716 = vadd.f32 %v691, %v715
        %v717 = vld [vmem:[%s438 + $0x2] sm:$0xff]
        %s718 = sld [smem:[#allocation11 + $0x21]]
        %v719 = vstv %s718
        %v720 = vmul.f32 %v719, %v717
        %v721 = vadd.f32 %v696, %v720
        %s722 = sld [smem:[#allocation11 + $0x22]]
        %v723 = vstv %s722
        %v724 = vmul.f32 %v723, %v717
        %v725 = vadd.f32 %v700, %v724
        %s726 = sld [smem:[#allocation11 + $0x23]]
        %v727 = vstv %s726
        %v728 = vmul.f32 %v727, %v717
        %v729 = vadd.f32 %v704, %v728
        %s730 = sld [smem:[#allocation11 + $0x45]]
        %v731 = vstv %s730
        %v732 = vmul.f32 %v731, %v717
        %v733 = vadd.f32 %v708, %v732
        %s734 = sld [smem:[#allocation11 + $0x46]]
        %v735 = vstv %s734
        %v736 = vmul.f32 %v735, %v717
        %v737 = vadd.f32 %v712, %v736
        %s738 = sld [smem:[#allocation11 + $0x47]]
        %v739 = vstv %s738
        %v740 = vmul.f32 %v739, %v717
        %v741 = vadd.f32 %v716, %v740
        %vm742 = vcmask 7168
        %743 = vst.msk [vmem:[#allocation3] sm:$0xff] %vm742, 0.0
        %s744 = scalar_lea.vmem [#allocation3], 8
        %vm745 = vcmask 138368
        %746 = vst.msk [vmem:[%s744] sm:$0xff] %vm745, 0.0
        %748 = vrot.lane.b32.xlu0 %v721, 1
        %v749 = vpop.permute.xlu0 %748
        %vm751 = vcmask 138248
        %752 = vst.msk [vmem:[#allocation3] sm:$0xff] %vm751, %v749
        %753 = vst.msk [vmem:[%s744] sm:$0xff] %vm401, %v729
        %v754 = vld [vmem:[#allocation3] sm:$0xff]
        %v755 = vadd.f32 %v725, %v754
        %v756 = vld [vmem:[%s744] sm:$0xff]
        %758 = vrot.lane.b32.xlu0 %v756, 127
        %v759 = vpop.permute.xlu0 %758
        %v761 = vadd.f32 %v755, %v759
        %762 = vst.msk [vmem:[%s380] sm:$0xff] %vm401, %v761
        %v763 = vsel %vm401, %v761, 0.0
        %v764 = vrot.slane %v763, 4
        %v765 = vadd.f32 %v763, %v764
        %v766 = vrot.slane %v765, 2
        %v767 = vadd.f32 %v765, %v766
        %v768 = vrot.slane %v767, 1
        %v769 = vadd.f32 %v767, %v768
        %770 = vst.msk [vmem:[%s387] sm:$0x1] %vm406, %v769
        %v771 = vmul.f32 %v761, %v761
        %v772 = vsel %vm401, %v771, 0.0
        %v773 = vrot.slane %v772, 4
        %v774 = vadd.f32 %v772, %v773
        %v775 = vrot.slane %v774, 2
        %v776 = vadd.f32 %v774, %v775
        %v777 = vrot.slane %v776, 1
        %v778 = vadd.f32 %v776, %v777
        %779 = vst.msk [vmem:[%s387 + $0x2] sm:$0x1] %vm406, %v778
        %781 = vrot.lane.b32.xlu0 %v733, 1
        %v782 = vpop.permute.xlu0 %781
        %784 = vst.msk [vmem:[#allocation3] sm:$0xff] %vm751, %v782
        %785 = vst.msk [vmem:[%s744] sm:$0xff] %vm401, %v741
        %v786 = vld [vmem:[#allocation3] sm:$0xff]
        %v787 = vadd.f32 %v737, %v786
        %v788 = vld [vmem:[%s744] sm:$0xff]
        %790 = vrot.lane.b32.xlu0 %v788, 127
        %v791 = vpop.permute.xlu0 %790
        %v793 = vadd.f32 %v787, %v791
        %s794 = scalar_lea.vmem %s380, 8 [#allocation12]
        %795 = vst.msk [vmem:[%s794] sm:$0xff] %vm401, %v793
        %v796 = vsel %vm401, %v793, 0.0
        %v797 = vrot.slane %v796, 4
        %v798 = vadd.f32 %v796, %v797
        %v799 = vrot.slane %v798, 2
        %v800 = vadd.f32 %v798, %v799
        %v801 = vrot.slane %v800, 1
        %v802 = vadd.f32 %v800, %v801
        %803 = vst.msk [vmem:[%s387 + $0x1] sm:$0x1] %vm406, %v802
        %v804 = vmul.f32 %v793, %v793
        %v805 = vsel %vm401, %v804, 0.0
        %v806 = vrot.slane %v805, 4
        %v807 = vadd.f32 %v805, %v806
        %v808 = vrot.slane %v807, 2
        %v809 = vadd.f32 %v807, %v808
        %v810 = vrot.slane %v809, 1
        %v811 = vadd.f32 %v809, %v810
        %812 = vst.msk [vmem:[%s387 + $0x3] sm:$0x1] %vm406, %v811
        %s813 = sand.u32 %s169, 1
        %s814 = scalar_lea.sflag [#allocation6], %s813
        %s815 = sand.u32 %s169, 1
        %s816 = smul.addr %s815, 16
        %s817 = scalar_lea.vmem [#allocation12], %s816
        %s818 = sand.u32 %s197, 1
        %s819 = scalar_lea.sflag [#allocation14], %s818
        %s820 = sand.u32 %s197, 1
        %s821 = smul.addr %s820, 4
        %s822 = scalar_lea.vmem [#allocation13], %s821
        // Predicated region
        $region53: #{tpu_custom_call.1} parent=35 // pred_check
          %p823 = pneg %p179
        $region54: #{tpu_custom_call.1} parent=35 // pred_check_branch
          %825 = sbr.rel (%p823) target = $region56
        $region55: #{tpu_custom_call.1} parent=35 // pred_region
          %s827 = ssub.s32 256, 256
          %828 = vsyncadd %s814, %s827
          %s829 = smul.addr %s34, 4
          %s830 = sadd.s32 %s35, %s829
          %s831 = smul.addr %s830, 128
          %s832 = scalar_lea.hbm %s4, %s831
          %s833 = sshll.u32 %s817, 4
          %s834 = int_to_ptr.vmem [resolvable:$true] %s833
          %839 = dma.vmem_to_hbm [thread:$0]  %s834, 256, %s832, %s814, 128, 256, 8
        $region56: #{tpu_custom_call.1} parent=35 // pred_fallthru
          _
        // Predicated region
        $region57: #{tpu_custom_call.1} parent=35 // pred_check
          %p840 = pneg %p207
        $region58: #{tpu_custom_call.1} parent=35 // pred_check_branch
          %842 = sbr.rel (%p840) target = $region60
        $region59: #{tpu_custom_call.1} parent=35 // pred_region
          %s844 = ssub.s32 64, 64
          %845 = vsyncadd %s819, %s844
          %s846 = smul.addr %s34, 2
          %s847 = sadd.s32 %s35, %s846
          %s848 = smul.addr %s847, 64
          %s849 = scalar_lea.hbm %s5, %s848
          %s851 = sshll.u32 %s822, 4
          %s852 = int_to_ptr.vmem [resolvable:$true] %s851
          %854 = dma.vmem_to_hbm [thread:$0]  %s852, 64, %s849, %s819
        $region60: #{tpu_custom_call.1} parent=35 // pred_fallthru
          _
      $region36: #{tpu_custom_call.1} parent=5 // pred_fallthru
        _
      %p855 = scmp.le.s32.totalorder 2, %s25
      // Predicated region
      $region61: #{tpu_custom_call.1} parent=5 // pred_check
        %p856 = pneg %p855
      $region62: #{tpu_custom_call.1} parent=5 // pred_check_branch
        %858 = sbr.rel (%p856) target = $region64
      $region63: #{tpu_custom_call.1} parent=5 // pred_region
        %s859 = ssub.s32 %s25, 2
        // Predicated region
        $region65: #{tpu_custom_call.1} parent=63 // pred_check
          %p860 = pneg %p185
        $region66: #{tpu_custom_call.1} parent=63 // pred_check_branch
          %862 = sbr.rel (%p860) target = $region68
        $region67: #{tpu_custom_call.1} parent=63 // pred_region
          %s863 = sand.u32 %s170, 1
          %s864 = scalar_lea.sflag [#allocation6], %s863
          %s865 = sand.u32 %s170, 1
          %s866 = smul.addr %s865, 16
          %s867 = scalar_lea.vmem [#allocation12], %s866
          %868 = dma.done %s864, 256
        $region68: #{tpu_custom_call.1} parent=63 // pred_fallthru
          _
        // Predicated region
        $region69: #{tpu_custom_call.1} parent=63 // pred_check
          %p869 = pneg %p213
        $region70: #{tpu_custom_call.1} parent=63 // pred_check_branch
          %871 = sbr.rel (%p869) target = $region72
        $region71: #{tpu_custom_call.1} parent=63 // pred_region
          %s872 = sand.u32 %s198, 1
          %s873 = scalar_lea.sflag [#allocation14], %s872
          %s874 = sand.u32 %s198, 1
          %s875 = smul.addr %s874, 4
          %s876 = scalar_lea.vmem [#allocation13], %s875
          %877 = dma.done %s873, 64
        $region72: #{tpu_custom_call.1} parent=63 // pred_fallthru
          _
      $region64: #{tpu_custom_call.1} parent=5 // pred_fallthru
        _
    $region6: #{tpu_custom_call.1} parent=1 // loop_footer
      %s29 = sadd.s32 1, %s25
    $region7: #{tpu_custom_call.1} parent=1 // loop_footer_branch
      %24 = sbr.rel target = $region3
    $region8: #{tpu_custom_call.1} parent=1 // loop_exit
      _
    %878 = vsyncpa [#allocation5], 1
    %s879 = scalar_lea.sflag [#allocation5], 1
    %880 = vsyncpa %s879, 1
    %881 = vsyncpa [#allocation9], 1
    %s882 = scalar_lea.sflag [#allocation9], 1
    %883 = vsyncpa %s882, 1
    %884 = vsyncpa [#allocation6], 1
    %s885 = scalar_lea.sflag [#allocation6], 1
    %886 = vsyncpa %s885, 1
    %887 = vsyncpa [#allocation14], 1
    %s888 = scalar_lea.sflag [#allocation14], 1
    %889 = vsyncpa %s888, 1
    %890 = vsyncpa [#allocation7], 1
    %s891 = scalar_lea.sflag [#allocation7], 1
    %892 = vsyncpa %s891, 1

</llo_original>
